<compile_context>
chip_gen: v7x
topology: tpu7x:2x2x1
jax: 0.10.0
libtpu: 0.0.40
codegen_flags: <defaults>
</compile_context>

<pallas_src>
import functools
import math

import jax
import jax.numpy as jnp
from jax.experimental import pallas as pl
from jax.experimental.pallas import tpu as pltpu


# ----------------------------------------------------------------------------
# Kernel (one grid step per batch element)
# ----------------------------------------------------------------------------

def _attention_kernel(qexp_ref, kexp_ref, vexp_ref, res_ref,
                      wq_ref, wk_ref, wv_ref, wfc_ref, lng_ref, lnb_ref,
                      out_ref, att_ref, *, H, Lq, Lk, C, d):
    f32 = jnp.float32
    bf16 = jnp.bfloat16
    eps = 1e-5

    # ---- fused projection + head split: ONE MXU matmul per tensor ----------
    # Host supplies block-diagonal expanded inputs (L*H, H*C) and stacked
    # per-chunk weights (H*C, d); row h*L + m of the result equals torch's
    # proj.view(B, H, -1, d)[b, h, m, :] exactly (softmax 1/sqrt(d) folded
    # into wq on the host), so each head is a contiguous, 8-sublane-aligned
    # 16-row slab -- no in-kernel permutation or copy loops needed.
    q_stack = jnp.dot(qexp_ref[...], wq_ref[...], preferred_element_type=f32)  # (H*Lq, d)
    k_stack = jnp.dot(kexp_ref[...], wk_ref[...], preferred_element_type=f32)  # (H*Lk, d)
    v_stack = jnp.dot(vexp_ref[...], wv_ref[...], preferred_element_type=f32)  # (H*Lk, d)

    att_acc = jnp.zeros((Lq, Lk), f32)
    xs = []
    for h in range(H):                      # statically unrolled, H is small
        qh = q_stack[h * Lq:(h + 1) * Lq, :].astype(bf16)     # (Lq, d)
        kh = k_stack[h * Lk:(h + 1) * Lk, :].astype(bf16)     # (Lk, d)
        vh = v_stack[h * Lk:(h + 1) * Lk, :].astype(bf16)     # (Lk, d)

        # energy (scale already folded into q); contraction over d.
        e = jax.lax.dot_general(qh, kh, (((1,), (1,)), ((), ())),
                                preferred_element_type=f32)    # (Lq, Lk)
        e = e - jnp.max(e, axis=-1, keepdims=True)
        p = jnp.exp(e)
        # NOTE: approx reciprocal goes to the EUP slot; rows of p sum to 1
        # only to ~1e-3, which is fine for eval-mode / the 5e-2 tolerance.
        p = p * pl.reciprocal(jnp.sum(p, axis=-1, keepdims=True), approx=True)
        att_acc = att_acc + p

        xs.append(jnp.dot(p.astype(bf16), vh,
                          preferred_element_type=f32))         # (Lq, d)

    # ---- gather heads (lane concat) + single fc matmul per batch ------------
    x = jnp.concatenate(xs, axis=-1)                           # (Lq, C)
    # TODO(synk): nn.Dropout on the fc output is identity (eval semantics).
    y = jnp.dot(x.astype(bf16), wfc_ref[...], preferred_element_type=f32)
    y = y + res_ref[...]                                       # residual (f32)

    # ---- LayerNorm (element-wise math kept in f32) ---------------------------
    mu = jnp.mean(y, axis=-1, keepdims=True)
    var = jnp.mean((y - mu) ** 2, axis=-1, keepdims=True)
    yn = (y - mu) * jax.lax.rsqrt(var + eps)
    out_ref[...] = (yn * lng_ref[...] + lnb_ref[...]).astype(out_ref.dtype)

    # Attention map in natural (Lq, Lk) order; torch's final permute(0,2,1)
    # is a free XLA transpose on the host side.
    att_ref[...] = (att_acc * (1.0 / H)).astype(att_ref.dtype)


# ----------------------------------------------------------------------------
# Host-side layout helpers (static permutation work lives here, not in-kernel)
# ----------------------------------------------------------------------------

def _expand_rows_for_head_split(x2d, num_head):
    """(N, C) -> (N*H, H*C): out[n*H + j, j*C:(j+1)*C] = x2d[n], zeros elsewhere.

    Matmul of this against the stacked weight of `_head_split_weight` yields
    the projection already in torch's `.view(B, H, -1, d)` row order."""
    n, c = x2d.shape
    eye = jnp.eye(num_head, dtype=x2d.dtype)                   # (H, H)
    out = x2d[:, None, None, :] * eye[None, :, :, None]        # (N, H, H, C)
    return out.reshape(n * num_head, num_head * c)


def _head_split_weight(w, num_head):
    """(C, Cout) -> (H*C, d): rows [j*C:(j+1)*C] = w[:, j*d:(j+1)*d]."""
    cin, cout = w.shape
    d = cout // num_head
    return jnp.transpose(w.reshape(cin, num_head, d), (1, 0, 2)).reshape(
        num_head * cin, d)


def attention_forward(params, query, key, value, num_head, attn_mask=None):
    """Pallas equivalent of Attention.forward; returns (x, attention)."""
    assert attn_mask is None  # TODO(synk): masked_fill path not implemented.
    B, Lq, C = query.shape
    Bk, Lk, Ck = key.shape
    assert Bk == B and Ck == C and value.shape == key.shape
    H = num_head
    assert C % H == 0
    d = C // H
    # Torch's `.view(B, H, -1, d)` split must not cut a row mid-way.
    assert Lq % H == 0 and Lk % H == 0

    f32, bf16 = jnp.float32, jnp.bfloat16
    inv_scale = 1.0 / math.sqrt(d)

    # Weights: stacked per-chunk layout, bf16 MXU operands, scale folded in.
    wq_big = _head_split_weight(params["wq"] * inv_scale, H).astype(bf16)  # (H*C, d)
    wk_big = _head_split_weight(params["wk"], H).astype(bf16)
    wv_big = _head_split_weight(params["wv"], H).astype(bf16)
    wfc_b = params["wfc"].astype(bf16)                                      # (C, C)

    # Inputs: block-diagonal expansion (the whole head-split permutation).
    q_exp = _expand_rows_for_head_split(query.reshape(B * Lq, C).astype(bf16), H)
    k_exp = _expand_rows_for_head_split(key.reshape(B * Lk, C).astype(bf16), H)
    v_exp = _expand_rows_for_head_split(value.reshape(B * Lk, C).astype(bf16), H)
    res = query.reshape(B * Lq, C).astype(f32)                              # residual

    kernel = functools.partial(_attention_kernel, H=H, Lq=Lq, Lk=Lk, C=C, d=d)

    # Advisory cost estimate for XLA scheduling around the custom call.
    flops = 2 * B * (Lq * H * (H * C) * d          # q projection
                     + 2 * Lk * H * (H * C) * d    # k, v projections
                     + 2 * H * Lq * Lk * d         # energy + P@V
                     + Lq * C * C)                 # fc
    transcendentals = B * (H * Lq * Lk + H * Lq + Lq)    # exp + recip + rsqrt
    bytes_accessed = ((q_exp.size + k_exp.size + v_exp.size) * 2
                      + res.size * 4
                      + (wq_big.size + wk_big.size + wv_big.size + wfc_b.size) * 2
                      + 2 * C * 4
                      + (B * Lq * C + B * Lq * Lk) * 4)
    cost = pl.CostEstimate(flops=int(flops),
                           transcendentals=int(transcendentals),
                           bytes_accessed=int(bytes_accessed))

    out2d, att2d = pl.pallas_call(
        kernel,
        grid=(B,),
        out_shape=(jax.ShapeDtypeStruct((B * Lq, C), f32),
                   jax.ShapeDtypeStruct((B * Lq, Lk), f32)),
        in_specs=[
            pl.BlockSpec((Lq * H, H * C), lambda b: (b, 0)),   # q expanded
            pl.BlockSpec((Lk * H, H * C), lambda b: (b, 0)),   # k expanded
            pl.BlockSpec((Lk * H, H * C), lambda b: (b, 0)),   # v expanded
            pl.BlockSpec((Lq, C), lambda b: (b, 0)),           # residual (raw query)
            pl.BlockSpec((H * C, d), lambda b: (0, 0)),        # wq (stacked, scaled)
            pl.BlockSpec((H * C, d), lambda b: (0, 0)),        # wk (stacked)
            pl.BlockSpec((H * C, d), lambda b: (0, 0)),        # wv (stacked)
            pl.BlockSpec((C, C), lambda b: (0, 0)),            # wfc
            pl.BlockSpec((1, C), lambda b: (0, 0)),            # LayerNorm gamma
            pl.BlockSpec((1, C), lambda b: (0, 0)),            # LayerNorm beta
        ],
        out_specs=(
            pl.BlockSpec((Lq, C), lambda b: (b, 0)),           # out
            pl.BlockSpec((Lq, Lk), lambda b: (b, 0)),          # att (pre-transpose)
        ),
        compiler_params=pltpu.CompilerParams(
            dimension_semantics=("parallel",)),
        cost_estimate=cost,
    )(q_exp, k_exp, v_exp, res, wq_big, wk_big, wv_big, wfc_b,
      params["ln_g"].astype(f32), params["ln_b"].astype(f32))

    out = out2d.reshape(B, Lq, C)
    att = jnp.swapaxes(att2d.reshape(B, Lq, Lk), 1, 2)   # torch permute(0,2,1)
    return out, att


attention_forward_jit = jax.jit(attention_forward, static_argnums=(4,))


# ----------------------------------------------------------------------------
# Parameter init (synthetic, deterministic) + pure-JAX reference
# ----------------------------------------------------------------------------

def init_attention_params(key, in_feature):
    kq, kk, kv, kf, kg, kb = jax.random.split(key, 6)
    s = 1.0 / math.sqrt(in_feature)
    f32 = jnp.float32
    return dict(
        wq=jax.random.normal(kq, (in_feature, in_feature), f32) * s,
        wk=jax.random.normal(kk, (in_feature, in_feature), f32) * s,
        wv=jax.random.normal(kv, (in_feature, in_feature), f32) * s,
        wfc=jax.random.normal(kf, (in_feature, in_feature), f32) * s,
        ln_g=1.0 + 0.05 * jax.random.normal(kg, (1, in_feature), f32),
        ln_b=0.05 * jax.random.normal(kb, (1, in_feature), f32),
    )


def attention_reference(params, query, key, value, num_head):
    """Direct jnp transcription of the PyTorch module (attn_mask=None, eval)."""
    B, Lq, C = query.shape
    d = C // num_head
    hp = "highest"
    qp = jnp.matmul(query, params["wq"], precision=hp)
    kp = jnp.matmul(key, params["wk"], precision=hp)
    vp = jnp.matmul(value, params["wv"], precision=hp)
    q4 = qp.reshape(B, num_head, -1, d)
    k4 = kp.reshape(B, num_head, -1, d)
    v4 = vp.reshape(B, num_head, -1, d)
    energy = jnp.einsum("bhie,bhje->bhij", q4, k4, precision=hp) / math.sqrt(d)
    p = jax.nn.softmax(energy, axis=-1)
    x4 = jnp.einsum("bhij,bhje->bhie", p, v4, precision=hp)
    x = jnp.transpose(x4, (0, 2, 1, 3)).reshape(B, Lq, C)
    att = jnp.transpose(jnp.sum(p, axis=1), (0, 2, 1)) / num_head
    y = jnp.matmul(x, params["wfc"], precision=hp) + query
    mu = jnp.mean(y, axis=-1, keepdims=True)
    var = jnp.mean((y - mu) ** 2, axis=-1, keepdims=True)
    out = (y - mu) / jnp.sqrt(var + 1e-5) * params["ln_g"] + params["ln_b"]
    return out, att


# ----------------------------------------------------------------------------
# main
# ----------------------------------------------------------------------------

if __name__ == "__main__":
    B, L, C, H = 2, 16, 32, 4          # in_feature=32, num_head=4, size_per_head=8

    master = jax.random.PRNGKey(0)
    kp, kq, kk, kv = jax.random.split(master, 4)
    params = init_attention_params(kp, C)
    query = jax.random.normal(kq, (B, L, C), jnp.float32)
    key_in = jax.random.normal(kk, (B, L, C), jnp.float32)
    value_in = jax.random.normal(kv, (B, L, C), jnp.float32)

    out, att = attention_forward_jit(params, query, key_in, value_in, H)
    out, att = jax.block_until_ready((out, att))

    assert out.shape == (B, L, C), out.shape
    assert att.shape == (B, L, L), att.shape
    assert bool(jnp.all(jnp.isfinite(out))) and bool(jnp.all(jnp.isfinite(att)))

    ref_out, ref_att = attention_reference(params, query, key_in, value_in, H)
    assert jnp.allclose(out, ref_out, atol=5e-2, rtol=5e-2), \
        float(jnp.max(jnp.abs(out - ref_out)))
    assert jnp.allclose(att, ref_att, atol=5e-2, rtol=5e-2), \
        float(jnp.max(jnp.abs(att - ref_att)))

    print("KERNEL_OK")
</pallas_src>

<mosaic_0001>
module attributes {stable_mosaic.version = 11 : i64} {
  func.func @_attention_kernel(%arg0: i32, %arg1: memref<64x128xbf16, #tpu.memory_space<vmem>>, %arg2: memref<64x128xbf16, #tpu.memory_space<vmem>>, %arg3: memref<64x128xbf16, #tpu.memory_space<vmem>>, %arg4: memref<16x32xf32, #tpu.memory_space<vmem>>, %arg5: memref<128x8xbf16, #tpu.memory_space<vmem>>, %arg6: memref<128x8xbf16, #tpu.memory_space<vmem>>, %arg7: memref<128x8xbf16, #tpu.memory_space<vmem>>, %arg8: memref<32x32xbf16, #tpu.memory_space<vmem>>, %arg9: memref<1x32xf32, #tpu.memory_space<vmem>>, %arg10: memref<1x32xf32, #tpu.memory_space<vmem>>, %arg11: memref<16x32xf32, #tpu.memory_space<vmem>>, %arg12: memref<16x16xf32, #tpu.memory_space<vmem>>) attributes {dimension_semantics = [#tpu.dimension_semantics<parallel>], iteration_bounds = array<i64: 2>, scalar_prefetch = 0 : i64, scratch_operands = 0 : i64, tpu.core_type = #tpu.core_type<tc>, window_params = [{transform_indices = @transform_0, window_bounds = array<i64: 64, 128>}, {transform_indices = @transform_1, window_bounds = array<i64: 64, 128>}, {transform_indices = @transform_2, window_bounds = array<i64: 64, 128>}, {transform_indices = @transform_3, window_bounds = array<i64: 16, 32>}, {pipeline_mode = #tpu.pipeline_mode<synchronous>, transform_indices = @transform_4, window_bounds = array<i64: 128, 8>}, {pipeline_mode = #tpu.pipeline_mode<synchronous>, transform_indices = @transform_5, window_bounds = array<i64: 128, 8>}, {pipeline_mode = #tpu.pipeline_mode<synchronous>, transform_indices = @transform_6, window_bounds = array<i64: 128, 8>}, {pipeline_mode = #tpu.pipeline_mode<synchronous>, transform_indices = @transform_7, window_bounds = array<i64: 32, 32>}, {pipeline_mode = #tpu.pipeline_mode<synchronous>, transform_indices = @transform_8, window_bounds = array<i64: 1, 32>}, {pipeline_mode = #tpu.pipeline_mode<synchronous>, transform_indices = @transform_9, window_bounds = array<i64: 1, 32>}, {transform_indices = @transform_10, window_bounds = array<i64: 16, 32>}, {transform_indices = @transform_11, window_bounds = array<i64: 16, 16>}]} {
    %c0 = arith.constant 0 : index
    %c0_0 = arith.constant 0 : index
    %0 = vector.load %arg1[%c0, %c0_0] : memref<64x128xbf16, #tpu.memory_space<vmem>>, vector<64x128xbf16>
    %c0_1 = arith.constant 0 : index
    %c0_2 = arith.constant 0 : index
    %1 = vector.load %arg5[%c0_1, %c0_2] : memref<128x8xbf16, #tpu.memory_space<vmem>>, vector<128x8xbf16>
    %cst = arith.constant dense<0.000000e+00> : vector<64x8xf32>
    %2 = tpu.matmul %0, %1, %cst {dimension_numbers = #tpu.dot_dimension_numbers<[1], [0], [0], [1], [0, 0, 1, 1], [], []>} : vector<64x128xbf16>, vector<128x8xbf16>, vector<64x8xf32> -> vector<64x8xf32>
    %c0_3 = arith.constant 0 : index
    %c0_4 = arith.constant 0 : index
    %3 = vector.load %arg2[%c0_3, %c0_4] : memref<64x128xbf16, #tpu.memory_space<vmem>>, vector<64x128xbf16>
    %c0_5 = arith.constant 0 : index
    %c0_6 = arith.constant 0 : index
    %4 = vector.load %arg6[%c0_5, %c0_6] : memref<128x8xbf16, #tpu.memory_space<vmem>>, vector<128x8xbf16>
    %cst_7 = arith.constant dense<0.000000e+00> : vector<64x8xf32>
    %5 = tpu.matmul %3, %4, %cst_7 {dimension_numbers = #tpu.dot_dimension_numbers<[1], [0], [0], [1], [0, 0, 1, 1], [], []>} : vector<64x128xbf16>, vector<128x8xbf16>, vector<64x8xf32> -> vector<64x8xf32>
    %c0_8 = arith.constant 0 : index
    %c0_9 = arith.constant 0 : index
    %6 = vector.load %arg3[%c0_8, %c0_9] : memref<64x128xbf16, #tpu.memory_space<vmem>>, vector<64x128xbf16>
    %c0_10 = arith.constant 0 : index
    %c0_11 = arith.constant 0 : index
    %7 = vector.load %arg7[%c0_10, %c0_11] : memref<128x8xbf16, #tpu.memory_space<vmem>>, vector<128x8xbf16>
    %cst_12 = arith.constant dense<0.000000e+00> : vector<64x8xf32>
    %8 = tpu.matmul %6, %7, %cst_12 {dimension_numbers = #tpu.dot_dimension_numbers<[1], [0], [0], [1], [0, 0, 1, 1], [], []>} : vector<64x128xbf16>, vector<128x8xbf16>, vector<64x8xf32> -> vector<64x8xf32>
    %cst_13 = arith.constant 0.000000e+00 : f32
    %9 = vector.broadcast %cst_13 : f32 to vector<16x16xf32>
    %10 = vector.extract_strided_slice %2 {offsets = [0, 0], sizes = [16, 8], strides = [1, 1]} : vector<64x8xf32> to vector<16x8xf32>
    %11 = arith.truncf %10 : vector<16x8xf32> to vector<16x8xbf16>
    %12 = vector.extract_strided_slice %5 {offsets = [0, 0], sizes = [16, 8], strides = [1, 1]} : vector<64x8xf32> to vector<16x8xf32>
    %13 = arith.truncf %12 : vector<16x8xf32> to vector<16x8xbf16>
    %14 = vector.extract_strided_slice %8 {offsets = [0, 0], sizes = [16, 8], strides = [1, 1]} : vector<64x8xf32> to vector<16x8xf32>
    %15 = arith.truncf %14 : vector<16x8xf32> to vector<16x8xbf16>
    %cst_14 = arith.constant dense<0.000000e+00> : vector<16x16xf32>
    %16 = tpu.matmul %11, %13, %cst_14 {dimension_numbers = #tpu.dot_dimension_numbers<[1], [1], [0], [0], [0, 0, 1, 0], [], []>} : vector<16x8xbf16>, vector<16x8xbf16>, vector<16x16xf32> -> vector<16x16xf32>
    %cst_15 = arith.constant dense<0xFF800000> : vector<16xf32>
    %17 = vector.multi_reduction <maximumf>, %16, %cst_15 [1] : vector<16x16xf32> to vector<16xf32>
    %18 = vector.shape_cast %17 : vector<16xf32> to vector<16x1xf32>
    %19 = vector.broadcast %18 : vector<16x1xf32> to vector<16x16xf32>
    %20 = arith.subf %16, %19 : vector<16x16xf32>
    %21 = math.exp %20 : vector<16x16xf32>
    %cst_16 = arith.constant dense<0.000000e+00> : vector<16xf32>
    %22 = vector.multi_reduction <add>, %21, %cst_16 [1] : vector<16x16xf32> to vector<16xf32>
    %23 = vector.shape_cast %22 : vector<16xf32> to vector<16x1xf32>
    %24 = tpu.reciprocal %23 {approx = true} : vector<16x1xf32> -> vector<16x1xf32>
    %25 = vector.broadcast %24 : vector<16x1xf32> to vector<16x16xf32>
    %26 = arith.mulf %21, %25 : vector<16x16xf32>
    %27 = arith.addf %9, %26 : vector<16x16xf32>
    %28 = arith.truncf %26 : vector<16x16xf32> to vector<16x16xbf16>
    %cst_17 = arith.constant dense<0.000000e+00> : vector<16x8xf32>
    %29 = tpu.matmul %28, %15, %cst_17 {dimension_numbers = #tpu.dot_dimension_numbers<[1], [0], [0], [1], [0, 0, 1, 1], [], []>} : vector<16x16xbf16>, vector<16x8xbf16>, vector<16x8xf32> -> vector<16x8xf32>
    %30 = vector.extract_strided_slice %2 {offsets = [16, 0], sizes = [16, 8], strides = [1, 1]} : vector<64x8xf32> to vector<16x8xf32>
    %31 = arith.truncf %30 : vector<16x8xf32> to vector<16x8xbf16>
    %32 = vector.extract_strided_slice %5 {offsets = [16, 0], sizes = [16, 8], strides = [1, 1]} : vector<64x8xf32> to vector<16x8xf32>
    %33 = arith.truncf %32 : vector<16x8xf32> to vector<16x8xbf16>
    %34 = vector.extract_strided_slice %8 {offsets = [16, 0], sizes = [16, 8], strides = [1, 1]} : vector<64x8xf32> to vector<16x8xf32>
    %35 = arith.truncf %34 : vector<16x8xf32> to vector<16x8xbf16>
    %cst_18 = arith.constant dense<0.000000e+00> : vector<16x16xf32>
    %36 = tpu.matmul %31, %33, %cst_18 {dimension_numbers = #tpu.dot_dimension_numbers<[1], [1], [0], [0], [0, 0, 1, 0], [], []>} : vector<16x8xbf16>, vector<16x8xbf16>, vector<16x16xf32> -> vector<16x16xf32>
    %cst_19 = arith.constant dense<0xFF800000> : vector<16xf32>
    %37 = vector.multi_reduction <maximumf>, %36, %cst_19 [1] : vector<16x16xf32> to vector<16xf32>
    %38 = vector.shape_cast %37 : vector<16xf32> to vector<16x1xf32>
    %39 = vector.broadcast %38 : vector<16x1xf32> to vector<16x16xf32>
    %40 = arith.subf %36, %39 : vector<16x16xf32>
    %41 = math.exp %40 : vector<16x16xf32>
    %cst_20 = arith.constant dense<0.000000e+00> : vector<16xf32>
    %42 = vector.multi_reduction <add>, %41, %cst_20 [1] : vector<16x16xf32> to vector<16xf32>
    %43 = vector.shape_cast %42 : vector<16xf32> to vector<16x1xf32>
    %44 = tpu.reciprocal %43 {approx = true} : vector<16x1xf32> -> vector<16x1xf32>
    %45 = vector.broadcast %44 : vector<16x1xf32> to vector<16x16xf32>
    %46 = arith.mulf %41, %45 : vector<16x16xf32>
    %47 = arith.addf %27, %46 : vector<16x16xf32>
    %48 = arith.truncf %46 : vector<16x16xf32> to vector<16x16xbf16>
    %cst_21 = arith.constant dense<0.000000e+00> : vector<16x8xf32>
    %49 = tpu.matmul %48, %35, %cst_21 {dimension_numbers = #tpu.dot_dimension_numbers<[1], [0], [0], [1], [0, 0, 1, 1], [], []>} : vector<16x16xbf16>, vector<16x8xbf16>, vector<16x8xf32> -> vector<16x8xf32>
    %50 = vector.extract_strided_slice %2 {offsets = [32, 0], sizes = [16, 8], strides = [1, 1]} : vector<64x8xf32> to vector<16x8xf32>
    %51 = arith.truncf %50 : vector<16x8xf32> to vector<16x8xbf16>
    %52 = vector.extract_strided_slice %5 {offsets = [32, 0], sizes = [16, 8], strides = [1, 1]} : vector<64x8xf32> to vector<16x8xf32>
    %53 = arith.truncf %52 : vector<16x8xf32> to vector<16x8xbf16>
    %54 = vector.extract_strided_slice %8 {offsets = [32, 0], sizes = [16, 8], strides = [1, 1]} : vector<64x8xf32> to vector<16x8xf32>
    %55 = arith.truncf %54 : vector<16x8xf32> to vector<16x8xbf16>
    %cst_22 = arith.constant dense<0.000000e+00> : vector<16x16xf32>
    %56 = tpu.matmul %51, %53, %cst_22 {dimension_numbers = #tpu.dot_dimension_numbers<[1], [1], [0], [0], [0, 0, 1, 0], [], []>} : vector<16x8xbf16>, vector<16x8xbf16>, vector<16x16xf32> -> vector<16x16xf32>
    %cst_23 = arith.constant dense<0xFF800000> : vector<16xf32>
    %57 = vector.multi_reduction <maximumf>, %56, %cst_23 [1] : vector<16x16xf32> to vector<16xf32>
    %58 = vector.shape_cast %57 : vector<16xf32> to vector<16x1xf32>
    %59 = vector.broadcast %58 : vector<16x1xf32> to vector<16x16xf32>
    %60 = arith.subf %56, %59 : vector<16x16xf32>
    %61 = math.exp %60 : vector<16x16xf32>
    %cst_24 = arith.constant dense<0.000000e+00> : vector<16xf32>
    %62 = vector.multi_reduction <add>, %61, %cst_24 [1] : vector<16x16xf32> to vector<16xf32>
    %63 = vector.shape_cast %62 : vector<16xf32> to vector<16x1xf32>
    %64 = tpu.reciprocal %63 {approx = true} : vector<16x1xf32> -> vector<16x1xf32>
    %65 = vector.broadcast %64 : vector<16x1xf32> to vector<16x16xf32>
    %66 = arith.mulf %61, %65 : vector<16x16xf32>
    %67 = arith.addf %47, %66 : vector<16x16xf32>
    %68 = arith.truncf %66 : vector<16x16xf32> to vector<16x16xbf16>
    %cst_25 = arith.constant dense<0.000000e+00> : vector<16x8xf32>
    %69 = tpu.matmul %68, %55, %cst_25 {dimension_numbers = #tpu.dot_dimension_numbers<[1], [0], [0], [1], [0, 0, 1, 1], [], []>} : vector<16x16xbf16>, vector<16x8xbf16>, vector<16x8xf32> -> vector<16x8xf32>
    %70 = vector.extract_strided_slice %2 {offsets = [48, 0], sizes = [16, 8], strides = [1, 1]} : vector<64x8xf32> to vector<16x8xf32>
    %71 = arith.truncf %70 : vector<16x8xf32> to vector<16x8xbf16>
    %72 = vector.extract_strided_slice %5 {offsets = [48, 0], sizes = [16, 8], strides = [1, 1]} : vector<64x8xf32> to vector<16x8xf32>
    %73 = arith.truncf %72 : vector<16x8xf32> to vector<16x8xbf16>
    %74 = vector.extract_strided_slice %8 {offsets = [48, 0], sizes = [16, 8], strides = [1, 1]} : vector<64x8xf32> to vector<16x8xf32>
    %75 = arith.truncf %74 : vector<16x8xf32> to vector<16x8xbf16>
    %cst_26 = arith.constant dense<0.000000e+00> : vector<16x16xf32>
    %76 = tpu.matmul %71, %73, %cst_26 {dimension_numbers = #tpu.dot_dimension_numbers<[1], [1], [0], [0], [0, 0, 1, 0], [], []>} : vector<16x8xbf16>, vector<16x8xbf16>, vector<16x16xf32> -> vector<16x16xf32>
    %cst_27 = arith.constant dense<0xFF800000> : vector<16xf32>
    %77 = vector.multi_reduction <maximumf>, %76, %cst_27 [1] : vector<16x16xf32> to vector<16xf32>
    %78 = vector.shape_cast %77 : vector<16xf32> to vector<16x1xf32>
    %79 = vector.broadcast %78 : vector<16x1xf32> to vector<16x16xf32>
    %80 = arith.subf %76, %79 : vector<16x16xf32>
    %81 = math.exp %80 : vector<16x16xf32>
    %cst_28 = arith.constant dense<0.000000e+00> : vector<16xf32>
    %82 = vector.multi_reduction <add>, %81, %cst_28 [1] : vector<16x16xf32> to vector<16xf32>
    %83 = vector.shape_cast %82 : vector<16xf32> to vector<16x1xf32>
    %84 = tpu.reciprocal %83 {approx = true} : vector<16x1xf32> -> vector<16x1xf32>
    %85 = vector.broadcast %84 : vector<16x1xf32> to vector<16x16xf32>
    %86 = arith.mulf %81, %85 : vector<16x16xf32>
    %87 = arith.addf %67, %86 : vector<16x16xf32>
    %88 = arith.truncf %86 : vector<16x16xf32> to vector<16x16xbf16>
    %cst_29 = arith.constant dense<0.000000e+00> : vector<16x8xf32>
    %89 = tpu.matmul %88, %75, %cst_29 {dimension_numbers = #tpu.dot_dimension_numbers<[1], [0], [0], [1], [0, 0, 1, 1], [], []>} : vector<16x16xbf16>, vector<16x8xbf16>, vector<16x8xf32> -> vector<16x8xf32>
    %90 = tpu.concatenate %29, %49, %69, %89 in 1 : vector<16x8xf32>, vector<16x8xf32>, vector<16x8xf32>, vector<16x8xf32> -> vector<16x32xf32>
    %91 = arith.truncf %90 : vector<16x32xf32> to vector<16x32xbf16>
    %c0_30 = arith.constant 0 : index
    %c0_31 = arith.constant 0 : index
    %92 = vector.load %arg8[%c0_30, %c0_31] : memref<32x32xbf16, #tpu.memory_space<vmem>>, vector<32x32xbf16>
    %cst_32 = arith.constant dense<0.000000e+00> : vector<16x32xf32>
    %93 = tpu.matmul %91, %92, %cst_32 {dimension_numbers = #tpu.dot_dimension_numbers<[1], [0], [0], [1], [0, 0, 1, 1], [], []>} : vector<16x32xbf16>, vector<32x32xbf16>, vector<16x32xf32> -> vector<16x32xf32>
    %c0_33 = arith.constant 0 : index
    %c0_34 = arith.constant 0 : index
    %94 = vector.load %arg4[%c0_33, %c0_34] : memref<16x32xf32, #tpu.memory_space<vmem>>, vector<16x32xf32>
    %95 = arith.addf %93, %94 : vector<16x32xf32>
    %cst_35 = arith.constant dense<0.000000e+00> : vector<16xf32>
    %96 = vector.multi_reduction <add>, %95, %cst_35 [1] : vector<16x32xf32> to vector<16xf32>
    %97 = vector.shape_cast %96 : vector<16xf32> to vector<16x1xf32>
    %cst_36 = arith.constant 3.200000e+01 : f32
    %98 = vector.broadcast %cst_36 : f32 to vector<16x1xf32>
    %99 = arith.divf %97, %98 : vector<16x1xf32>
    %100 = vector.broadcast %99 : vector<16x1xf32> to vector<16x32xf32>
    %101 = arith.subf %95, %100 : vector<16x32xf32>
    %102 = arith.mulf %101, %101 : vector<16x32xf32>
    %cst_37 = arith.constant dense<0.000000e+00> : vector<16xf32>
    %103 = vector.multi_reduction <add>, %102, %cst_37 [1] : vector<16x32xf32> to vector<16xf32>
    %104 = vector.shape_cast %103 : vector<16xf32> to vector<16x1xf32>
    %cst_38 = arith.constant 3.200000e+01 : f32
    %105 = vector.broadcast %cst_38 : f32 to vector<16x1xf32>
    %106 = arith.divf %104, %105 : vector<16x1xf32>
    %107 = vector.broadcast %99 : vector<16x1xf32> to vector<16x32xf32>
    %108 = arith.subf %95, %107 : vector<16x32xf32>
    %cst_39 = arith.constant 9.99999974E-6 : f32
    %109 = vector.broadcast %cst_39 : f32 to vector<16x1xf32>
    %110 = arith.addf %106, %109 : vector<16x1xf32>
    %111 = math.rsqrt %110 : vector<16x1xf32>
    %112 = vector.broadcast %111 : vector<16x1xf32> to vector<16x32xf32>
    %113 = arith.mulf %108, %112 : vector<16x32xf32>
    %c0_40 = arith.constant 0 : index
    %c0_41 = arith.constant 0 : index
    %114 = vector.load %arg9[%c0_40, %c0_41] : memref<1x32xf32, #tpu.memory_space<vmem>>, vector<1x32xf32>
    %115 = vector.broadcast %114 : vector<1x32xf32> to vector<16x32xf32>
    %116 = arith.mulf %113, %115 : vector<16x32xf32>
    %c0_42 = arith.constant 0 : index
    %c0_43 = arith.constant 0 : index
    %117 = vector.load %arg10[%c0_42, %c0_43] : memref<1x32xf32, #tpu.memory_space<vmem>>, vector<1x32xf32>
    %118 = vector.broadcast %117 : vector<1x32xf32> to vector<16x32xf32>
    %119 = arith.addf %116, %118 : vector<16x32xf32>
    %c0_44 = arith.constant 0 : index
    %c0_45 = arith.constant 0 : index
    %120 = vector.load %arg11[%c0_44, %c0_45] : memref<16x32xf32, #tpu.memory_space<vmem>>, vector<16x32xf32>
    tpu.vector_store %arg11[%c0_44, %c0_45], %119 {strides = array<i32>} : memref<16x32xf32, #tpu.memory_space<vmem>>, vector<16x32xf32>,
    %cst_46 = arith.constant 2.500000e-01 : f32
    %121 = vector.broadcast %cst_46 : f32 to vector<16x16xf32>
    %122 = arith.mulf %87, %121 : vector<16x16xf32>
    %c0_47 = arith.constant 0 : index
    %c0_48 = arith.constant 0 : index
    %123 = vector.load %arg12[%c0_47, %c0_48] : memref<16x16xf32, #tpu.memory_space<vmem>>, vector<16x16xf32>
    tpu.vector_store %arg12[%c0_47, %c0_48], %122 {strides = array<i32>} : memref<16x16xf32, #tpu.memory_space<vmem>>, vector<16x16xf32>,
    return
  }
  func.func @transform_0(%arg0: i32) -> (i32, i32) {
    %c0_i32 = arith.constant 0 : i32
    %c0_i32_0 = arith.constant 0 : i32
    return %arg0, %c0_i32 : i32, i32
  }
  func.func @transform_1(%arg0: i32) -> (i32, i32) {
    %c0_i32 = arith.constant 0 : i32
    %c0_i32_0 = arith.constant 0 : i32
    return %arg0, %c0_i32 : i32, i32
  }
  func.func @transform_2(%arg0: i32) -> (i32, i32) {
    %c0_i32 = arith.constant 0 : i32
    %c0_i32_0 = arith.constant 0 : i32
    return %arg0, %c0_i32 : i32, i32
  }
  func.func @transform_3(%arg0: i32) -> (i32, i32) {
    %c0_i32 = arith.constant 0 : i32
    %c0_i32_0 = arith.constant 0 : i32
    return %arg0, %c0_i32 : i32, i32
  }
  func.func @transform_4(%arg0: i32) -> (i32, i32) {
    %c0_i32 = arith.constant 0 : i32
    %c0_i32_0 = arith.constant 0 : i32
    %c0_i32_1 = arith.constant 0 : i32
    return %c0_i32, %c0_i32_0 : i32, i32
  }
  func.func @transform_5(%arg0: i32) -> (i32, i32) {
    %c0_i32 = arith.constant 0 : i32
    %c0_i32_0 = arith.constant 0 : i32
    %c0_i32_1 = arith.constant 0 : i32
    return %c0_i32, %c0_i32_0 : i32, i32
  }
  func.func @transform_6(%arg0: i32) -> (i32, i32) {
    %c0_i32 = arith.constant 0 : i32
    %c0_i32_0 = arith.constant 0 : i32
    %c0_i32_1 = arith.constant 0 : i32
    return %c0_i32, %c0_i32_0 : i32, i32
  }
  func.func @transform_7(%arg0: i32) -> (i32, i32) {
    %c0_i32 = arith.constant 0 : i32
    %c0_i32_0 = arith.constant 0 : i32
    %c0_i32_1 = arith.constant 0 : i32
    return %c0_i32, %c0_i32_0 : i32, i32
  }
  func.func @transform_8(%arg0: i32) -> (i32, i32) {
    %c0_i32 = arith.constant 0 : i32
    %c0_i32_0 = arith.constant 0 : i32
    %c0_i32_1 = arith.constant 0 : i32
    return %c0_i32, %c0_i32_0 : i32, i32
  }
  func.func @transform_9(%arg0: i32) -> (i32, i32) {
    %c0_i32 = arith.constant 0 : i32
    %c0_i32_0 = arith.constant 0 : i32
    %c0_i32_1 = arith.constant 0 : i32
    return %c0_i32, %c0_i32_0 : i32, i32
  }
  func.func @transform_10(%arg0: i32) -> (i32, i32) {
    %c0_i32 = arith.constant 0 : i32
    %c0_i32_0 = arith.constant 0 : i32
    return %arg0, %c0_i32 : i32, i32
  }
  func.func @transform_11(%arg0: i32) -> (i32, i32) {
    %c0_i32 = arith.constant 0 : i32
    %c0_i32_0 = arith.constant 0 : i32
    return %arg0, %c0_i32 : i32, i32
  }
}

</mosaic_0001>

<llo_original>
// kernel: attention_forward.1
$region0: #{attention_forward.1}
  #allocation0 [shape = 'u32[]', space=smem, size = 0x4, offset = 0x4, fixed_abs, tag = 'smem constant byte address 0x4 - core index']
  #allocation1 [shape = 'u32[144,128]{1,0:T(1,128)}', space=vmem, size = 0x12000, scoped, tag = 'internal scratch']
  %s0 = inlined_call_operand.vmem [shape: bf16[128,128], index: 0, kind: input, shape index: {}]
  %s1 = inlined_call_operand.vmem [shape: bf16[128,128], index: 1, kind: input, shape index: {}]
  %s2 = inlined_call_operand.vmem [shape: bf16[128,128], index: 2, kind: input, shape index: {}]
  %s3 = inlined_call_operand.vmem [shape: f32[32,32], index: 3, kind: input, shape index: {}]
  %s4 = inlined_call_operand.vmem [shape: bf16[128,8], index: 4, kind: input, shape index: {}]
  %s5 = inlined_call_operand.vmem [shape: bf16[128,8], index: 5, kind: input, shape index: {}]
  %s6 = inlined_call_operand.vmem [shape: bf16[128,8], index: 6, kind: input, shape index: {}]
  %s7 = inlined_call_operand.vmem [shape: bf16[32,32], index: 7, kind: input, shape index: {}]
  %s8 = inlined_call_operand.vmem [shape: f32[1,32], index: 8, kind: input, shape index: {}]
  %s9 = inlined_call_operand.vmem [shape: f32[1,32], index: 9, kind: input, shape index: {}]
  %s10 = inlined_call_operand.hbm [shape: f32[32,32], index: 10, kind: output, shape index: {0}]
  %s11 = inlined_call_operand.vmem [shape: f32[32,16], index: 11, kind: output, shape index: {1}]
  %12 = xla_tuple %s10, %s11
  %s13 = sld [smem:[#allocation0]]
  $region81: #{attention_forward.1} parent=0
    _
  %s15 = ssub.s32 1, %s13
  %s16 = scalar_select 0, %s15, %s13
  $region1: #{attention_forward.1} parent=0
    #allocation2 [shape = 'u8[16384]{0}', space=vmem, size = 0x4000, scoped, tag = 'output window, operand 0']
    #allocation3 [shape = 's32[2]{0}', space=sflag, size = 0x8, scoped, tag = 'scoped memory for attention_forward.1']
    %17 = vsyncpa [#allocation3], 0
    %s18 = scalar_lea.sflag [#allocation3], 1
    %19 = vsyncpa %s18, 0
    loop: start=0, step=1, limit=4
    $region2: #{attention_forward.1} parent=1 // loop_pre_header
      _
    $region3: #{attention_forward.1} parent=1 // loop_header
      %s21 = sphi 0, %s25
      %p22 = scmp.ge.s32.totalorder %s21, 4
      %s31 = sphi 0, %s33
      %s34 = sphi 0, %s31
      %s35 = sphi 0, %s34
      %s51 = sphi 0, %s35
      %s57 = sphi 0, %s59
      %s60 = sphi 0, %s57
      %s61 = sphi 0, %s60
      %s77 = sphi 0, %s61
      %s83 = sphi 0, %s85
      %s86 = sphi 0, %s83
      %s87 = sphi 0, %s86
      %s103 = sphi 0, %s87
      %s109 = sphi 0, %s111
      %s112 = sphi 0, %s109
      %s113 = sphi 0, %s112
      %s129 = sphi 0, %s113
      %s133 = sphi 0, %s133
      %s135 = sphi 0, %s133
      %s136 = sphi 0, %s135
      %s150 = sphi 0, %s136
      %s154 = sphi 0, %s154
      %s156 = sphi 0, %s154
      %s157 = sphi 0, %s156
      %s171 = sphi 0, %s157
      %s175 = sphi 0, %s175
      %s177 = sphi 0, %s175
      %s178 = sphi 0, %s177
      %s192 = sphi 0, %s178
      %s196 = sphi 0, %s196
      %s198 = sphi 0, %s196
      %s199 = sphi 0, %s198
      %s213 = sphi 0, %s199
      %s217 = sphi 0, %s217
      %s219 = sphi 0, %s217
      %s220 = sphi 0, %s219
      %s234 = sphi 0, %s220
      %s238 = sphi 0, %s238
      %s240 = sphi 0, %s238
      %s241 = sphi 0, %s240
      %s255 = sphi 0, %s241
      %s261 = sphi 0, %s263
      %s264 = sphi 0, %s261
      %s265 = sphi 0, %s264
      %s281 = sphi 0, %s265
      %s287 = sphi 0, %s289
      %s290 = sphi 0, %s287
      %s291 = sphi 0, %s290
      %s307 = sphi 0, %s291
    $region4: #{attention_forward.1} parent=1 // loop_header_branch
      %24 = sbr.rel (%p22) target = $region8
    $region5: #{attention_forward.1} parent=1 // loop_body
      %s26 = ssub.s32 %s21, 1
      %s27 = ssub.s32 %s21, 2
      %s28 = sadd.s32 %s21, 1
      %s29 = ssub.s32 %s21, %s28
      %p30 = scmp.eq.s32.totalorder %s29, 0
      %s32 = sadd.s32 %s31, 1
      %s33 = scalar_select %p30, %s31, %s32
      %p36 = pneg %p30
      %p37 = scmp.eq.s32.totalorder %s21, 1
      %p38 = por %p36, %p37
      %p39 = scmp.ne.s32.totalorder %s31, %s34
      %p40 = scmp.eq.s32.totalorder %s21, 0
      %p41 = por %p39, %p40
      %p42 = scmp.ne.s32.totalorder %s31, %s34
      %p43 = scmp.eq.s32.totalorder %s26, 1
      %p44 = por %p42, %p43
      %p45 = scmp.ne.s32.totalorder %s34, %s35
      %p46 = scmp.eq.s32.totalorder %s26, 0
      %p47 = por %p45, %p46
      %p48 = scmp.ne.s32.totalorder %s34, %s35
      %p49 = scmp.eq.s32.totalorder %s27, 1
      %p50 = por %p48, %p49
      %p52 = scmp.ne.s32.totalorder %s35, %s51
      %p53 = scmp.eq.s32.totalorder %s27, 0
      %p54 = por %p52, %p53
      %s55 = ssub.s32 %s21, %s28
      %p56 = scmp.eq.s32.totalorder %s55, 0
      %s58 = sadd.s32 %s57, 1
      %s59 = scalar_select %p56, %s57, %s58
      %p62 = pneg %p56
      %p63 = scmp.eq.s32.totalorder %s21, 1
      %p64 = por %p62, %p63
      %p65 = scmp.ne.s32.totalorder %s57, %s60
      %p66 = scmp.eq.s32.totalorder %s21, 0
      %p67 = por %p65, %p66
      %p68 = scmp.ne.s32.totalorder %s57, %s60
      %p69 = scmp.eq.s32.totalorder %s26, 1
      %p70 = por %p68, %p69
      %p71 = scmp.ne.s32.totalorder %s60, %s61
      %p72 = scmp.eq.s32.totalorder %s26, 0
      %p73 = por %p71, %p72
      %p74 = scmp.ne.s32.totalorder %s60, %s61
      %p75 = scmp.eq.s32.totalorder %s27, 1
      %p76 = por %p74, %p75
      %p78 = scmp.ne.s32.totalorder %s61, %s77
      %p79 = scmp.eq.s32.totalorder %s27, 0
      %p80 = por %p78, %p79
      %s81 = ssub.s32 %s21, %s28
      %p82 = scmp.eq.s32.totalorder %s81, 0
      %s84 = sadd.s32 %s83, 1
      %s85 = scalar_select %p82, %s83, %s84
      %p88 = pneg %p82
      %p89 = scmp.eq.s32.totalorder %s21, 1
      %p90 = por %p88, %p89
      %p91 = scmp.ne.s32.totalorder %s83, %s86
      %p92 = scmp.eq.s32.totalorder %s21, 0
      %p93 = por %p91, %p92
      %p94 = scmp.ne.s32.totalorder %s83, %s86
      %p95 = scmp.eq.s32.totalorder %s26, 1
      %p96 = por %p94, %p95
      %p97 = scmp.ne.s32.totalorder %s86, %s87
      %p98 = scmp.eq.s32.totalorder %s26, 0
      %p99 = por %p97, %p98
      %p100 = scmp.ne.s32.totalorder %s86, %s87
      %p101 = scmp.eq.s32.totalorder %s27, 1
      %p102 = por %p100, %p101
      %p104 = scmp.ne.s32.totalorder %s87, %s103
      %p105 = scmp.eq.s32.totalorder %s27, 0
      %p106 = por %p104, %p105
      %s107 = ssub.s32 %s21, %s28
      %p108 = scmp.eq.s32.totalorder %s107, 0
      %s110 = sadd.s32 %s109, 1
      %s111 = scalar_select %p108, %s109, %s110
      %p114 = pneg %p108
      %p115 = scmp.eq.s32.totalorder %s21, 1
      %p116 = por %p114, %p115
      %p117 = scmp.ne.s32.totalorder %s109, %s112
      %p118 = scmp.eq.s32.totalorder %s21, 0
      %p119 = por %p117, %p118
      %p120 = scmp.ne.s32.totalorder %s109, %s112
      %p121 = scmp.eq.s32.totalorder %s26, 1
      %p122 = por %p120, %p121
      %p123 = scmp.ne.s32.totalorder %s112, %s113
      %p124 = scmp.eq.s32.totalorder %s26, 0
      %p125 = por %p123, %p124
      %p126 = scmp.ne.s32.totalorder %s112, %s113
      %p127 = scmp.eq.s32.totalorder %s27, 1
      %p128 = por %p126, %p127
      %p130 = scmp.ne.s32.totalorder %s113, %s129
      %p131 = scmp.eq.s32.totalorder %s27, 0
      %p132 = por %p130, %p131
      %s134 = sadd.s32 %s133, 1
      %p137 = scmp.eq.s32.totalorder %s21, 1
      %p138 = scmp.ne.s32.totalorder %s133, %s135
      %p139 = scmp.eq.s32.totalorder %s21, 0
      %p140 = por %p138, %p139
      %p141 = scmp.ne.s32.totalorder %s133, %s135
      %p142 = scmp.eq.s32.totalorder %s26, 1
      %p143 = por %p141, %p142
      %p144 = scmp.ne.s32.totalorder %s135, %s136
      %p145 = scmp.eq.s32.totalorder %s26, 0
      %p146 = por %p144, %p145
      %p147 = scmp.ne.s32.totalorder %s135, %s136
      %p148 = scmp.eq.s32.totalorder %s27, 1
      %p149 = por %p147, %p148
      %p151 = scmp.ne.s32.totalorder %s136, %s150
      %p152 = scmp.eq.s32.totalorder %s27, 0
      %p153 = por %p151, %p152
      %s155 = sadd.s32 %s154, 1
      %p158 = scmp.eq.s32.totalorder %s21, 1
      %p159 = scmp.ne.s32.totalorder %s154, %s156
      %p160 = scmp.eq.s32.totalorder %s21, 0
      %p161 = por %p159, %p160
      %p162 = scmp.ne.s32.totalorder %s154, %s156
      %p163 = scmp.eq.s32.totalorder %s26, 1
      %p164 = por %p162, %p163
      %p165 = scmp.ne.s32.totalorder %s156, %s157
      %p166 = scmp.eq.s32.totalorder %s26, 0
      %p167 = por %p165, %p166
      %p168 = scmp.ne.s32.totalorder %s156, %s157
      %p169 = scmp.eq.s32.totalorder %s27, 1
      %p170 = por %p168, %p169
      %p172 = scmp.ne.s32.totalorder %s157, %s171
      %p173 = scmp.eq.s32.totalorder %s27, 0
      %p174 = por %p172, %p173
      %s176 = sadd.s32 %s175, 1
      %p179 = scmp.eq.s32.totalorder %s21, 1
      %p180 = scmp.ne.s32.totalorder %s175, %s177
      %p181 = scmp.eq.s32.totalorder %s21, 0
      %p182 = por %p180, %p181
      %p183 = scmp.ne.s32.totalorder %s175, %s177
      %p184 = scmp.eq.s32.totalorder %s26, 1
      %p185 = por %p183, %p184
      %p186 = scmp.ne.s32.totalorder %s177, %s178
      %p187 = scmp.eq.s32.totalorder %s26, 0
      %p188 = por %p186, %p187
      %p189 = scmp.ne.s32.totalorder %s177, %s178
      %p190 = scmp.eq.s32.totalorder %s27, 1
      %p191 = por %p189, %p190
      %p193 = scmp.ne.s32.totalorder %s178, %s192
      %p194 = scmp.eq.s32.totalorder %s27, 0
      %p195 = por %p193, %p194
      %s197 = sadd.s32 %s196, 1
      %p200 = scmp.eq.s32.totalorder %s21, 1
      %p201 = scmp.ne.s32.totalorder %s196, %s198
      %p202 = scmp.eq.s32.totalorder %s21, 0
      %p203 = por %p201, %p202
      %p204 = scmp.ne.s32.totalorder %s196, %s198
      %p205 = scmp.eq.s32.totalorder %s26, 1
      %p206 = por %p204, %p205
      %p207 = scmp.ne.s32.totalorder %s198, %s199
      %p208 = scmp.eq.s32.totalorder %s26, 0
      %p209 = por %p207, %p208
      %p210 = scmp.ne.s32.totalorder %s198, %s199
      %p211 = scmp.eq.s32.totalorder %s27, 1
      %p212 = por %p210, %p211
      %p214 = scmp.ne.s32.totalorder %s199, %s213
      %p215 = scmp.eq.s32.totalorder %s27, 0
      %p216 = por %p214, %p215
      %s218 = sadd.s32 %s217, 1
      %p221 = scmp.eq.s32.totalorder %s21, 1
      %p222 = scmp.ne.s32.totalorder %s217, %s219
      %p223 = scmp.eq.s32.totalorder %s21, 0
      %p224 = por %p222, %p223
      %p225 = scmp.ne.s32.totalorder %s217, %s219
      %p226 = scmp.eq.s32.totalorder %s26, 1
      %p227 = por %p225, %p226
      %p228 = scmp.ne.s32.totalorder %s219, %s220
      %p229 = scmp.eq.s32.totalorder %s26, 0
      %p230 = por %p228, %p229
      %p231 = scmp.ne.s32.totalorder %s219, %s220
      %p232 = scmp.eq.s32.totalorder %s27, 1
      %p233 = por %p231, %p232
      %p235 = scmp.ne.s32.totalorder %s220, %s234
      %p236 = scmp.eq.s32.totalorder %s27, 0
      %p237 = por %p235, %p236
      %s239 = sadd.s32 %s238, 1
      %p242 = scmp.eq.s32.totalorder %s21, 1
      %p243 = scmp.ne.s32.totalorder %s238, %s240
      %p244 = scmp.eq.s32.totalorder %s21, 0
      %p245 = por %p243, %p244
      %p246 = scmp.ne.s32.totalorder %s238, %s240
      %p247 = scmp.eq.s32.totalorder %s26, 1
      %p248 = por %p246, %p247
      %p249 = scmp.ne.s32.totalorder %s240, %s241
      %p250 = scmp.eq.s32.totalorder %s26, 0
      %p251 = por %p249, %p250
      %p252 = scmp.ne.s32.totalorder %s240, %s241
      %p253 = scmp.eq.s32.totalorder %s27, 1
      %p254 = por %p252, %p253
      %p256 = scmp.ne.s32.totalorder %s241, %s255
      %p257 = scmp.eq.s32.totalorder %s27, 0
      %p258 = por %p256, %p257
      %s259 = ssub.s32 %s21, %s28
      %p260 = scmp.eq.s32.totalorder %s259, 0
      %s262 = sadd.s32 %s261, 1
      %s263 = scalar_select %p260, %s261, %s262
      %p266 = pneg %p260
      %p267 = scmp.eq.s32.totalorder %s21, 1
      %p268 = por %p266, %p267
      %p269 = scmp.ne.s32.totalorder %s261, %s264
      %p270 = scmp.eq.s32.totalorder %s21, 0
      %p271 = por %p269, %p270
      %p272 = scmp.ne.s32.totalorder %s261, %s264
      %p273 = scmp.eq.s32.totalorder %s26, 1
      %p274 = por %p272, %p273
      %p275 = scmp.ne.s32.totalorder %s264, %s265
      %p276 = scmp.eq.s32.totalorder %s26, 0
      %p277 = por %p275, %p276
      %p278 = scmp.ne.s32.totalorder %s264, %s265
      %p279 = scmp.eq.s32.totalorder %s27, 1
      %p280 = por %p278, %p279
      %p282 = scmp.ne.s32.totalorder %s265, %s281
      %p283 = scmp.eq.s32.totalorder %s27, 0
      %p284 = por %p282, %p283
      %s285 = ssub.s32 %s21, %s28
      %p286 = scmp.eq.s32.totalorder %s285, 0
      %s288 = sadd.s32 %s287, 1
      %s289 = scalar_select %p286, %s287, %s288
      %p292 = pneg %p286
      %p293 = scmp.eq.s32.totalorder %s21, 1
      %p294 = por %p292, %p293
      %p295 = scmp.ne.s32.totalorder %s287, %s290
      %p296 = scmp.eq.s32.totalorder %s21, 0
      %p297 = por %p295, %p296
      %p298 = scmp.ne.s32.totalorder %s287, %s290
      %p299 = scmp.eq.s32.totalorder %s26, 1
      %p300 = por %p298, %p299
      %p301 = scmp.ne.s32.totalorder %s290, %s291
      %p302 = scmp.eq.s32.totalorder %s26, 0
      %p303 = por %p301, %p302
      %p304 = scmp.ne.s32.totalorder %s290, %s291
      %p305 = scmp.eq.s32.totalorder %s27, 1
      %p306 = por %p304, %p305
      %p308 = scmp.ne.s32.totalorder %s291, %s307
      %p309 = scmp.eq.s32.totalorder %s27, 0
      %p310 = por %p308, %p309
      %p311 = scmp.le.s32.totalorder 1, %s21
      %p312 = scmp.lt.s32.totalorder %s21, 3
      %p313 = pnand %p311, %p312
      %p314 = pneg %p313
      // Predicated region
      $region9: #{attention_forward.1} parent=5 // pred_check
        _
      $region10: #{attention_forward.1} parent=5 // pred_check_branch
        %316 = sbr.rel (%p313) target = $region12
      $region11: #{attention_forward.1} parent=5 // pred_region
        %s317 = ssub.s32 %s21, 1
        // Predicated region
        $region13: #{attention_forward.1} parent=11 // pred_check
          %p318 = pneg %p146
        $region14: #{attention_forward.1} parent=11 // pred_check_branch
          %320 = sbr.rel (%p318) target = $region16
        $region15: #{attention_forward.1} parent=11 // pred_region
          _
        $region16: #{attention_forward.1} parent=11 // pred_fallthru
          _
        // Predicated region
        $region17: #{attention_forward.1} parent=11 // pred_check
          %p321 = pneg %p167
        $region18: #{attention_forward.1} parent=11 // pred_check_branch
          %323 = sbr.rel (%p321) target = $region20
        $region19: #{attention_forward.1} parent=11 // pred_region
          _
        $region20: #{attention_forward.1} parent=11 // pred_fallthru
          _
        // Predicated region
        $region21: #{attention_forward.1} parent=11 // pred_check
          %p324 = pneg %p188
        $region22: #{attention_forward.1} parent=11 // pred_check_branch
          %326 = sbr.rel (%p324) target = $region24
        $region23: #{attention_forward.1} parent=11 // pred_region
          _
        $region24: #{attention_forward.1} parent=11 // pred_fallthru
          _
        // Predicated region
        $region25: #{attention_forward.1} parent=11 // pred_check
          %p327 = pneg %p209
        $region26: #{attention_forward.1} parent=11 // pred_check_branch
          %329 = sbr.rel (%p327) target = $region28
        $region27: #{attention_forward.1} parent=11 // pred_region
          _
        $region28: #{attention_forward.1} parent=11 // pred_fallthru
          _
        // Predicated region
        $region29: #{attention_forward.1} parent=11 // pred_check
          %p330 = pneg %p230
        $region30: #{attention_forward.1} parent=11 // pred_check_branch
          %332 = sbr.rel (%p330) target = $region32
        $region31: #{attention_forward.1} parent=11 // pred_region
          _
        $region32: #{attention_forward.1} parent=11 // pred_fallthru
          _
        // Predicated region
        $region33: #{attention_forward.1} parent=11 // pred_check
          %p333 = pneg %p251
        $region34: #{attention_forward.1} parent=11 // pred_check_branch
          %335 = sbr.rel (%p333) target = $region36
        $region35: #{attention_forward.1} parent=11 // pred_region
          _
        $region36: #{attention_forward.1} parent=11 // pred_fallthru
          _
      $region12: #{attention_forward.1} parent=5 // pred_fallthru
        _
      %p336 = scmp.lt.s32.totalorder %s21, 2
      // Predicated region
      $region37: #{attention_forward.1} parent=5 // pred_check
        %p337 = pneg %p336
      $region38: #{attention_forward.1} parent=5 // pred_check_branch
        %339 = sbr.rel (%p337) target = $region40
      $region39: #{attention_forward.1} parent=5 // pred_region
        // Predicated region
        $region41: #{attention_forward.1} parent=39 // pred_check
          %p340 = pneg %p41
        $region42: #{attention_forward.1} parent=39 // pred_check_branch
          %342 = sbr.rel (%p340) target = $region44
        $region43: #{attention_forward.1} parent=39 // pred_region
          %s343 = smul.u32 8, %s21
          %p344 = scmp.lt.s32.totalorder %s343, 15
          %s345 = scalar_select %p344, %s343, 15
          %s346 = smul.addr %s345, 4
          %s347 = scalar_lea.vmem %s0, %s346
          %s348 = smul.u32 8, %s21
        $region44: #{attention_forward.1} parent=39 // pred_fallthru
          _
        // Predicated region
        $region45: #{attention_forward.1} parent=39 // pred_check
          %p349 = pneg %p67
        $region46: #{attention_forward.1} parent=39 // pred_check_branch
          %351 = sbr.rel (%p349) target = $region48
        $region47: #{attention_forward.1} parent=39 // pred_region
          %s352 = smul.u32 8, %s21
          %p353 = scmp.lt.s32.totalorder %s352, 15
          %s354 = scalar_select %p353, %s352, 15
          %s355 = smul.addr %s354, 4
          %s356 = scalar_lea.vmem %s1, %s355
          %s357 = smul.u32 8, %s21
        $region48: #{attention_forward.1} parent=39 // pred_fallthru
          _
        // Predicated region
        $region49: #{attention_forward.1} parent=39 // pred_check
          %p358 = pneg %p93
        $region50: #{attention_forward.1} parent=39 // pred_check_branch
          %360 = sbr.rel (%p358) target = $region52
        $region51: #{attention_forward.1} parent=39 // pred_region
          %s361 = smul.u32 8, %s21
          %p362 = scmp.lt.s32.totalorder %s361, 15
          %s363 = scalar_select %p362, %s361, 15
          %s364 = smul.addr %s363, 4
          %s365 = scalar_lea.vmem %s2, %s364
          %s366 = smul.u32 8, %s21
        $region52: #{attention_forward.1} parent=39 // pred_fallthru
          _
        // Predicated region
        $region53: #{attention_forward.1} parent=39 // pred_check
          %p367 = pneg %p119
        $region54: #{attention_forward.1} parent=39 // pred_check_branch
          %369 = sbr.rel (%p367) target = $region56
        $region55: #{attention_forward.1} parent=39 // pred_region
          %s370 = smul.u32 2, %s21
          %p371 = scmp.lt.s32.totalorder %s370, 3
          %s372 = scalar_select %p371, %s370, 3
          %s373 = smul.addr %s372, 8
          %s374 = scalar_lea.vmem %s3, %s373
          %s375 = smul.u32 2, %s21
        $region56: #{attention_forward.1} parent=39 // pred_fallthru
          _
      $region40: #{attention_forward.1} parent=5 // pred_fallthru
        _
      %p376 = scmp.le.s32.totalorder 1, %s21
      %p377 = scmp.lt.s32.totalorder %s21, 3
      %p378 = pnand %p376, %p377
      %p379 = pneg %p378
      // Predicated region
      $region57: #{attention_forward.1} parent=5 // pred_check
        _
      $region58: #{attention_forward.1} parent=5 // pred_check_branch
        %381 = sbr.rel (%p378) target = $region60
      $region59: #{attention_forward.1} parent=5 // pred_region
        %s382 = ssub.s32 %s21, 1
        %s383 = smul.u32 8, %s26
        %p384 = scmp.lt.s32.totalorder %s383, 15
        %s385 = scalar_select %p384, %s383, 15
        %s386 = smul.addr %s385, 4
        %s387 = scalar_lea.vmem %s0, %s386
        %p388 = pneg %p47
        %p389 = pneg %p44
        %s390 = smul.u32 8, %s26
        %p391 = scmp.lt.s32.totalorder %s390, 15
        %s392 = scalar_select %p391, %s390, 15
        %s393 = smul.addr %s392, 4
        %s394 = scalar_lea.vmem %s1, %s393
        %p395 = pneg %p73
        %p396 = pneg %p70
        %s397 = smul.u32 8, %s26
        %p398 = scmp.lt.s32.totalorder %s397, 15
        %s399 = scalar_select %p398, %s397, 15
        %s400 = smul.addr %s399, 4
        %s401 = scalar_lea.vmem %s2, %s400
        %p402 = pneg %p99
        %p403 = pneg %p96
        %s404 = smul.u32 2, %s26
        %p405 = scmp.lt.s32.totalorder %s404, 3
        %s406 = scalar_select %p405, %s404, 3
        %s407 = smul.addr %s406, 8
        %s408 = scalar_lea.vmem %s3, %s407
        %p409 = pneg %p125
        %p410 = pneg %p122
        %p411 = pneg %p146
        %p412 = pneg %p143
        %p413 = pneg %p167
        %p414 = pneg %p164
        %p415 = pneg %p188
        %p416 = pneg %p185
        %p417 = pneg %p209
        %p418 = pneg %p206
        %p419 = pneg %p230
        %p420 = pneg %p227
        %p421 = pneg %p251
        %p422 = pneg %p248
        %p423 = pneg %p277
        %p424 = pneg %p274
        %s425 = sand.u32 %s264, 1
        %s426 = scalar_lea.sflag [#allocation3], %s425
        %s427 = sand.u32 %s264, 1
        %s428 = smul.addr %s427, 16
        %s429 = scalar_lea.vmem [#allocation2], %s428
        %p430 = pneg %p303
        %p431 = pneg %p300
        %s432 = smul.u32 2, %s26
        %p433 = scmp.lt.s32.totalorder %s432, 3
        %s434 = scalar_select %p433, %s432, 3
        %s435 = smul.addr %s434, 8
        %s436 = scalar_lea.vmem %s11, %s435
        %s437 = smul.u32 8, %s26
        %p438 = scmp.lt.s32.totalorder %s437, 15
        %s439 = scalar_select %p438, %s437, 15
        %s440 = smul.addr %s439, 4
        %s441 = scalar_lea.vmem %s0, %s440
        %s442 = smul.u32 8, %s26
        %s443 = smul.u32 8, %s26
        %p444 = scmp.lt.s32.totalorder %s443, 15
        %s445 = scalar_select %p444, %s443, 15
        %s446 = smul.addr %s445, 4
        %s447 = scalar_lea.vmem %s1, %s446
        %s448 = smul.u32 8, %s26
        %s449 = smul.u32 8, %s26
        %p450 = scmp.lt.s32.totalorder %s449, 15
        %s451 = scalar_select %p450, %s449, 15
        %s452 = smul.addr %s451, 4
        %s453 = scalar_lea.vmem %s2, %s452
        %s454 = smul.u32 8, %s26
        %s455 = smul.u32 2, %s26
        %p456 = scmp.lt.s32.totalorder %s455, 3
        %s457 = scalar_select %p456, %s455, 3
        %s458 = smul.addr %s457, 8
        %s459 = scalar_lea.vmem %s3, %s458
        %s460 = smul.u32 2, %s26
        %s461 = smul.u32 2, %s26
        %s462 = smul.u32 2, %s26
        %p463 = scmp.lt.s32.totalorder %s462, 3
        %s464 = scalar_select %p463, %s462, 3
        %s465 = smul.addr %s464, 8
        %s466 = scalar_lea.vmem %s11, %s465
        %s467 = smul.u32 2, %s26
        %v469 = vld [vmem:[%s441] sm:$0xf]
        %v470 = vld [vmem:[%s441 + $0x4] sm:$0xf]
        %v471 = vld [vmem:[%s441 + $0x8] sm:$0xf]
        %v472 = vld [vmem:[%s441 + $0xc] sm:$0xf]
        %v473 = vld [vmem:[%s441 + $0x10] sm:$0xf]
        %v474 = vld [vmem:[%s441 + $0x14] sm:$0xf]
        %v475 = vld [vmem:[%s441 + $0x18] sm:$0xf]
        %v476 = vld [vmem:[%s441 + $0x1c] sm:$0xf]
        %v477 = vld [vmem:[%s4] sm:$0xf]
        %v478 = vld [vmem:[%s4 + $0x4] sm:$0xf]
        %v479 = vld [vmem:[%s4 + $0x8] sm:$0xf]
        %v480 = vld [vmem:[%s4 + $0xc] sm:$0xf]
        %v481 = vld [vmem:[%s4 + $0x10] sm:$0xf]
        %v482 = vld [vmem:[%s4 + $0x14] sm:$0xf]
        %v483 = vld [vmem:[%s4 + $0x18] sm:$0xf]
        %v484 = vld [vmem:[%s4 + $0x1c] sm:$0xf]
        %v485 = vld [vmem:[%s4 + $0x20] sm:$0xf]
        %v486 = vld [vmem:[%s4 + $0x24] sm:$0xf]
        %v487 = vld [vmem:[%s4 + $0x28] sm:$0xf]
        %v488 = vld [vmem:[%s4 + $0x2c] sm:$0xf]
        %v489 = vld [vmem:[%s4 + $0x30] sm:$0xf]
        %v490 = vld [vmem:[%s4 + $0x34] sm:$0xf]
        %v491 = vld [vmem:[%s4 + $0x38] sm:$0xf]
        %v492 = vld [vmem:[%s4 + $0x3c] sm:$0xf]
        %v501 = vunpack.c.l.b16 %v469
        %v502 = vunpack.c.l.b16 %v470
        %v503 = vunpack.c.l.b16 %v471
        %v504 = vunpack.c.l.b16 %v472
        %v505 = vunpack.c.l.b16 %v473
        %v506 = vunpack.c.l.b16 %v474
        %v507 = vunpack.c.l.b16 %v475
        %v508 = vunpack.c.l.b16 %v476
        %v509 = vpack.c.b16 %v502, %v501
        %v510 = vpack.c.b16 %v504, %v503
        %v511 = vpack.c.b16 %v506, %v505
        %v512 = vpack.c.b16 %v508, %v507
        %v533 = vunpack.c.l.b16 %v477
        %v534 = vunpack.c.l.b16 %v478
        %v535 = vunpack.c.l.b16 %v479
        %v536 = vunpack.c.l.b16 %v480
        %v537 = vunpack.c.l.b16 %v481
        %v538 = vunpack.c.l.b16 %v482
        %v539 = vunpack.c.l.b16 %v483
        %v540 = vunpack.c.l.b16 %v484
        %v541 = vunpack.c.l.b16 %v485
        %v542 = vunpack.c.l.b16 %v486
        %v543 = vunpack.c.l.b16 %v487
        %v544 = vunpack.c.l.b16 %v488
        %v545 = vunpack.c.l.b16 %v489
        %v546 = vunpack.c.l.b16 %v490
        %v547 = vunpack.c.l.b16 %v491
        %v548 = vunpack.c.l.b16 %v492
        %v549 = vpack.c.b16 %v534, %v533
        %v550 = vpack.c.b16 %v536, %v535
        %v551 = vpack.c.b16 %v538, %v537
        %v552 = vpack.c.b16 %v540, %v539
        %v553 = vpack.c.b16 %v542, %v541
        %v554 = vpack.c.b16 %v544, %v543
        %v555 = vpack.c.b16 %v546, %v545
        %v556 = vpack.c.b16 %v548, %v547
        %565 = vmatprep.subr.bf16.mxu0 0
        %566 = vmatpush1.bf16.msra.mxu0 %v549
        %567 = vmatprep.subr.bf16.mxu0 0
        %568 = vmatpush1.bf16.msra.mxu0 %v550
        %569 = vmatprep.subr.bf16.mxu0 0
        %570 = vmatpush1.bf16.msra.mxu0 %v551
        %571 = vmatprep.subr.bf16.mxu0 0
        %572 = vmatpush1.bf16.msra.mxu0 %v552
        %573 = vmatprep.subr.bf16.mxu0 0
        %574 = vmatpush1.bf16.msra.mxu0 %v553
        %575 = vmatprep.subr.bf16.mxu0 0
        %576 = vmatpush1.bf16.msra.mxu0 %v554
        %577 = vmatprep.subr.bf16.mxu0 0
        %578 = vmatpush1.bf16.msra.mxu0 %v555
        %579 = vmatprep.subr.bf16.mxu0 0
        %580 = vmatpush1.bf16.msra.mxu0 %v556
        %581 = vmatprep.subr.bf16.mxu0 0
        %582 = vmatpush1.bf16.msra.mxu0 0
        %583 = vmatprep.subr.bf16.mxu0 0
        %584 = vmatpush1.bf16.msra.mxu0 0
        %585 = vmatprep.subr.bf16.mxu0 0
        %586 = vmatpush1.bf16.msra.mxu0 0
        %587 = vmatprep.subr.bf16.mxu0 0
        %588 = vmatpush1.bf16.msra.mxu0 0
        %589 = vmatprep.subr.bf16.mxu0 0
        %590 = vmatpush1.bf16.msra.mxu0 0
        %591 = vmatprep.subr.bf16.mxu0 0
        %592 = vmatpush1.bf16.msra.mxu0 0
        %593 = vmatprep.subr.bf16.mxu0 0
        %594 = vmatpush1.bf16.msra.mxu0 0
        %595 = vmatprep.subr.bf16.mxu0 0
        %596 = vmatpush1.bf16.msra.mxu0 0
        %597 = vmatprep.mubr.bf16.mxu0 0
        %598 = vmatmul.mubr.bf16.gmra.mrb[0].mxu0 %v509
        %v599 = vpop.f32.mrb[0].mxu0
        %v600 = vadd.f32 0.0, %v599
        %v601 = vpop.f32.mrb[0].mxu0
        %v602 = vpop.f32.mrb[0].mxu0
        %v603 = vadd.f32 0.0, %v602
        %v604 = vpop.f32.mrb[0].mxu0
        %605 = vmatprep.mubr.bf16.mxu0 0
        %606 = vmatmul.mubr.bf16.gmra.mrb[0].mxu0 %v510
        %v607 = vpop.f32.mrb[0].mxu0
        %v608 = vadd.f32 0.0, %v607
        %v609 = vpop.f32.mrb[0].mxu0
        %v610 = vpop.f32.mrb[0].mxu0
        %v611 = vadd.f32 0.0, %v610
        %v612 = vpop.f32.mrb[0].mxu0
        %613 = vmatprep.mubr.bf16.mxu0 0
        %614 = vmatmul.mubr.bf16.gmra.mrb[0].mxu0 %v511
        %v615 = vpop.f32.mrb[0].mxu0
        %v616 = vadd.f32 0.0, %v615
        %v617 = vpop.f32.mrb[0].mxu0
        %v618 = vpop.f32.mrb[0].mxu0
        %v619 = vadd.f32 0.0, %v618
        %v620 = vpop.f32.mrb[0].mxu0
        %621 = vmatprep.mubr.bf16.mxu0 0
        %622 = vmatmul.mubr.bf16.gmra.mrb[0].mxu0 %v512
        %v623 = vpop.f32.mrb[0].mxu0
        %v624 = vadd.f32 0.0, %v623
        %v625 = vpop.f32.mrb[0].mxu0
        %v626 = vpop.f32.mrb[0].mxu0
        %v627 = vadd.f32 0.0, %v626
        %v628 = vpop.f32.mrb[0].mxu0
        %629 = vdwg.mxu0
        %v630 = vld [vmem:[%s447] sm:$0xf]
        %v631 = vld [vmem:[%s447 + $0x4] sm:$0xf]
        %v632 = vld [vmem:[%s447 + $0x8] sm:$0xf]
        %v633 = vld [vmem:[%s447 + $0xc] sm:$0xf]
        %v634 = vld [vmem:[%s447 + $0x10] sm:$0xf]
        %v635 = vld [vmem:[%s447 + $0x14] sm:$0xf]
        %v636 = vld [vmem:[%s447 + $0x18] sm:$0xf]
        %v637 = vld [vmem:[%s447 + $0x1c] sm:$0xf]
        %v638 = vld [vmem:[%s5] sm:$0xf]
        %v639 = vld [vmem:[%s5 + $0x4] sm:$0xf]
        %v640 = vld [vmem:[%s5 + $0x8] sm:$0xf]
        %v641 = vld [vmem:[%s5 + $0xc] sm:$0xf]
        %v642 = vld [vmem:[%s5 + $0x10] sm:$0xf]
        %v643 = vld [vmem:[%s5 + $0x14] sm:$0xf]
        %v644 = vld [vmem:[%s5 + $0x18] sm:$0xf]
        %v645 = vld [vmem:[%s5 + $0x1c] sm:$0xf]
        %v646 = vld [vmem:[%s5 + $0x20] sm:$0xf]
        %v647 = vld [vmem:[%s5 + $0x24] sm:$0xf]
        %v648 = vld [vmem:[%s5 + $0x28] sm:$0xf]
        %v649 = vld [vmem:[%s5 + $0x2c] sm:$0xf]
        %v650 = vld [vmem:[%s5 + $0x30] sm:$0xf]
        %v651 = vld [vmem:[%s5 + $0x34] sm:$0xf]
        %v652 = vld [vmem:[%s5 + $0x38] sm:$0xf]
        %v653 = vld [vmem:[%s5 + $0x3c] sm:$0xf]
        %v662 = vunpack.c.l.b16 %v630
        %v663 = vunpack.c.l.b16 %v631
        %v664 = vunpack.c.l.b16 %v632
        %v665 = vunpack.c.l.b16 %v633
        %v666 = vunpack.c.l.b16 %v634
        %v667 = vunpack.c.l.b16 %v635
        %v668 = vunpack.c.l.b16 %v636
        %v669 = vunpack.c.l.b16 %v637
        %v670 = vpack.c.b16 %v663, %v662
        %v671 = vpack.c.b16 %v665, %v664
        %v672 = vpack.c.b16 %v667, %v666
        %v673 = vpack.c.b16 %v669, %v668
        %v694 = vunpack.c.l.b16 %v638
        %v695 = vunpack.c.l.b16 %v639
        %v696 = vunpack.c.l.b16 %v640
        %v697 = vunpack.c.l.b16 %v641
        %v698 = vunpack.c.l.b16 %v642
        %v699 = vunpack.c.l.b16 %v643
        %v700 = vunpack.c.l.b16 %v644
        %v701 = vunpack.c.l.b16 %v645
        %v702 = vunpack.c.l.b16 %v646
        %v703 = vunpack.c.l.b16 %v647
        %v704 = vunpack.c.l.b16 %v648
        %v705 = vunpack.c.l.b16 %v649
        %v706 = vunpack.c.l.b16 %v650
        %v707 = vunpack.c.l.b16 %v651
        %v708 = vunpack.c.l.b16 %v652
        %v709 = vunpack.c.l.b16 %v653
        %v710 = vpack.c.b16 %v695, %v694
        %v711 = vpack.c.b16 %v697, %v696
        %v712 = vpack.c.b16 %v699, %v698
        %v713 = vpack.c.b16 %v701, %v700
        %v714 = vpack.c.b16 %v703, %v702
        %v715 = vpack.c.b16 %v705, %v704
        %v716 = vpack.c.b16 %v707, %v706
        %v717 = vpack.c.b16 %v709, %v708
        %726 = vmatprep.subr.bf16.mxu0 0
        %727 = vmatpush1.bf16.msra.mxu0 %v710
        %728 = vmatprep.subr.bf16.mxu0 0
        %729 = vmatpush1.bf16.msra.mxu0 %v711
        %730 = vmatprep.subr.bf16.mxu0 0
        %731 = vmatpush1.bf16.msra.mxu0 %v712
        %732 = vmatprep.subr.bf16.mxu0 0
        %733 = vmatpush1.bf16.msra.mxu0 %v713
        %734 = vmatprep.subr.bf16.mxu0 0
        %735 = vmatpush1.bf16.msra.mxu0 %v714
        %736 = vmatprep.subr.bf16.mxu0 0
        %737 = vmatpush1.bf16.msra.mxu0 %v715
        %738 = vmatprep.subr.bf16.mxu0 0
        %739 = vmatpush1.bf16.msra.mxu0 %v716
        %740 = vmatprep.subr.bf16.mxu0 0
        %741 = vmatpush1.bf16.msra.mxu0 %v717
        %742 = vmatprep.subr.bf16.mxu0 0
        %743 = vmatpush1.bf16.msra.mxu0 0
        %744 = vmatprep.subr.bf16.mxu0 0
        %745 = vmatpush1.bf16.msra.mxu0 0
        %746 = vmatprep.subr.bf16.mxu0 0
        %747 = vmatpush1.bf16.msra.mxu0 0
        %748 = vmatprep.subr.bf16.mxu0 0
        %749 = vmatpush1.bf16.msra.mxu0 0
        %750 = vmatprep.subr.bf16.mxu0 0
        %751 = vmatpush1.bf16.msra.mxu0 0
        %752 = vmatprep.subr.bf16.mxu0 0
        %753 = vmatpush1.bf16.msra.mxu0 0
        %754 = vmatprep.subr.bf16.mxu0 0
        %755 = vmatpush1.bf16.msra.mxu0 0
        %756 = vmatprep.subr.bf16.mxu0 0
        %757 = vmatpush1.bf16.msra.mxu0 0
        %758 = vmatprep.mubr.bf16.mxu0 0
        %759 = vmatmul.mubr.bf16.gmra.mrb[0].mxu0 %v670
        %v760 = vpop.f32.mrb[0].mxu0
        %v761 = vadd.f32 0.0, %v760
        %v762 = vpop.f32.mrb[0].mxu0
        %v763 = vpop.f32.mrb[0].mxu0
        %v764 = vadd.f32 0.0, %v763
        %v765 = vpop.f32.mrb[0].mxu0
        %766 = vmatprep.mubr.bf16.mxu0 0
        %767 = vmatmul.mubr.bf16.gmra.mrb[0].mxu0 %v671
        %v768 = vpop.f32.mrb[0].mxu0
        %v769 = vadd.f32 0.0, %v768
        %v770 = vpop.f32.mrb[0].mxu0
        %v771 = vpop.f32.mrb[0].mxu0
        %v772 = vadd.f32 0.0, %v771
        %v773 = vpop.f32.mrb[0].mxu0
        %774 = vmatprep.mubr.bf16.mxu0 0
        %775 = vmatmul.mubr.bf16.gmra.mrb[0].mxu0 %v672
        %v776 = vpop.f32.mrb[0].mxu0
        %v777 = vadd.f32 0.0, %v776
        %v778 = vpop.f32.mrb[0].mxu0
        %v779 = vpop.f32.mrb[0].mxu0
        %v780 = vadd.f32 0.0, %v779
        %v781 = vpop.f32.mrb[0].mxu0
        %782 = vmatprep.mubr.bf16.mxu0 0
        %783 = vmatmul.mubr.bf16.gmra.mrb[0].mxu0 %v673
        %v784 = vpop.f32.mrb[0].mxu0
        %v785 = vadd.f32 0.0, %v784
        %v786 = vpop.f32.mrb[0].mxu0
        %v787 = vpop.f32.mrb[0].mxu0
        %v788 = vadd.f32 0.0, %v787
        %v789 = vpop.f32.mrb[0].mxu0
        %790 = vdwg.mxu0
        %v791 = vld [vmem:[%s453] sm:$0xf]
        %v792 = vld [vmem:[%s453 + $0x4] sm:$0xf]
        %v793 = vld [vmem:[%s453 + $0x8] sm:$0xf]
        %v794 = vld [vmem:[%s453 + $0xc] sm:$0xf]
        %v795 = vld [vmem:[%s453 + $0x10] sm:$0xf]
        %v796 = vld [vmem:[%s453 + $0x14] sm:$0xf]
        %v797 = vld [vmem:[%s453 + $0x18] sm:$0xf]
        %v798 = vld [vmem:[%s453 + $0x1c] sm:$0xf]
        %v799 = vld [vmem:[%s6] sm:$0xf]
        %v800 = vld [vmem:[%s6 + $0x4] sm:$0xf]
        %v801 = vld [vmem:[%s6 + $0x8] sm:$0xf]
        %v802 = vld [vmem:[%s6 + $0xc] sm:$0xf]
        %v803 = vld [vmem:[%s6 + $0x10] sm:$0xf]
        %v804 = vld [vmem:[%s6 + $0x14] sm:$0xf]
        %v805 = vld [vmem:[%s6 + $0x18] sm:$0xf]
        %v806 = vld [vmem:[%s6 + $0x1c] sm:$0xf]
        %v807 = vld [vmem:[%s6 + $0x20] sm:$0xf]
        %v808 = vld [vmem:[%s6 + $0x24] sm:$0xf]
        %v809 = vld [vmem:[%s6 + $0x28] sm:$0xf]
        %v810 = vld [vmem:[%s6 + $0x2c] sm:$0xf]
        %v811 = vld [vmem:[%s6 + $0x30] sm:$0xf]
        %v812 = vld [vmem:[%s6 + $0x34] sm:$0xf]
        %v813 = vld [vmem:[%s6 + $0x38] sm:$0xf]
        %v814 = vld [vmem:[%s6 + $0x3c] sm:$0xf]
        %v823 = vunpack.c.l.b16 %v791
        %v824 = vunpack.c.l.b16 %v792
        %v825 = vunpack.c.l.b16 %v793
        %v826 = vunpack.c.l.b16 %v794
        %v827 = vunpack.c.l.b16 %v795
        %v828 = vunpack.c.l.b16 %v796
        %v829 = vunpack.c.l.b16 %v797
        %v830 = vunpack.c.l.b16 %v798
        %v831 = vpack.c.b16 %v824, %v823
        %v832 = vpack.c.b16 %v826, %v825
        %v833 = vpack.c.b16 %v828, %v827
        %v834 = vpack.c.b16 %v830, %v829
        %v855 = vunpack.c.l.b16 %v799
        %v856 = vunpack.c.l.b16 %v800
        %v857 = vunpack.c.l.b16 %v801
        %v858 = vunpack.c.l.b16 %v802
        %v859 = vunpack.c.l.b16 %v803
        %v860 = vunpack.c.l.b16 %v804
        %v861 = vunpack.c.l.b16 %v805
        %v862 = vunpack.c.l.b16 %v806
        %v863 = vunpack.c.l.b16 %v807
        %v864 = vunpack.c.l.b16 %v808
        %v865 = vunpack.c.l.b16 %v809
        %v866 = vunpack.c.l.b16 %v810
        %v867 = vunpack.c.l.b16 %v811
        %v868 = vunpack.c.l.b16 %v812
        %v869 = vunpack.c.l.b16 %v813
        %v870 = vunpack.c.l.b16 %v814
        %v871 = vpack.c.b16 %v856, %v855
        %v872 = vpack.c.b16 %v858, %v857
        %v873 = vpack.c.b16 %v860, %v859
        %v874 = vpack.c.b16 %v862, %v861
        %v875 = vpack.c.b16 %v864, %v863
        %v876 = vpack.c.b16 %v866, %v865
        %v877 = vpack.c.b16 %v868, %v867
        %v878 = vpack.c.b16 %v870, %v869
        %887 = vmatprep.subr.bf16.mxu0 0
        %888 = vmatpush1.bf16.msra.mxu0 %v871
        %889 = vmatprep.subr.bf16.mxu0 0
        %890 = vmatpush1.bf16.msra.mxu0 %v872
        %891 = vmatprep.subr.bf16.mxu0 0
        %892 = vmatpush1.bf16.msra.mxu0 %v873
        %893 = vmatprep.subr.bf16.mxu0 0
        %894 = vmatpush1.bf16.msra.mxu0 %v874
        %895 = vmatprep.subr.bf16.mxu0 0
        %896 = vmatpush1.bf16.msra.mxu0 %v875
        %897 = vmatprep.subr.bf16.mxu0 0
        %898 = vmatpush1.bf16.msra.mxu0 %v876
        %899 = vmatprep.subr.bf16.mxu0 0
        %900 = vmatpush1.bf16.msra.mxu0 %v877
        %901 = vmatprep.subr.bf16.mxu0 0
        %902 = vmatpush1.bf16.msra.mxu0 %v878
        %903 = vmatprep.subr.bf16.mxu0 0
        %904 = vmatpush1.bf16.msra.mxu0 0
        %905 = vmatprep.subr.bf16.mxu0 0
        %906 = vmatpush1.bf16.msra.mxu0 0
        %907 = vmatprep.subr.bf16.mxu0 0
        %908 = vmatpush1.bf16.msra.mxu0 0
        %909 = vmatprep.subr.bf16.mxu0 0
        %910 = vmatpush1.bf16.msra.mxu0 0
        %911 = vmatprep.subr.bf16.mxu0 0
        %912 = vmatpush1.bf16.msra.mxu0 0
        %913 = vmatprep.subr.bf16.mxu0 0
        %914 = vmatpush1.bf16.msra.mxu0 0
        %915 = vmatprep.subr.bf16.mxu0 0
        %916 = vmatpush1.bf16.msra.mxu0 0
        %917 = vmatprep.subr.bf16.mxu0 0
        %918 = vmatpush1.bf16.msra.mxu0 0
        %919 = vmatprep.mubr.bf16.mxu0 0
        %920 = vmatmul.mubr.bf16.gmra.mrb[0].mxu0 %v831
        %v921 = vpop.f32.mrb[0].mxu0
        %v922 = vadd.f32 0.0, %v921
        %v923 = vpop.f32.mrb[0].mxu0
        %v924 = vpop.f32.mrb[0].mxu0
        %v925 = vadd.f32 0.0, %v924
        %v926 = vpop.f32.mrb[0].mxu0
        %927 = vmatprep.mubr.bf16.mxu0 0
        %928 = vmatmul.mubr.bf16.gmra.mrb[0].mxu0 %v832
        %v929 = vpop.f32.mrb[0].mxu0
        %v930 = vadd.f32 0.0, %v929
        %v931 = vpop.f32.mrb[0].mxu0
        %v932 = vpop.f32.mrb[0].mxu0
        %v933 = vadd.f32 0.0, %v932
        %v934 = vpop.f32.mrb[0].mxu0
        %935 = vmatprep.mubr.bf16.mxu0 0
        %936 = vmatmul.mubr.bf16.gmra.mrb[0].mxu0 %v833
        %v937 = vpop.f32.mrb[0].mxu0
        %v938 = vadd.f32 0.0, %v937
        %v939 = vpop.f32.mrb[0].mxu0
        %v940 = vpop.f32.mrb[0].mxu0
        %v941 = vadd.f32 0.0, %v940
        %v942 = vpop.f32.mrb[0].mxu0
        %943 = vmatprep.mubr.bf16.mxu0 0
        %944 = vmatmul.mubr.bf16.gmra.mrb[0].mxu0 %v834
        %v945 = vpop.f32.mrb[0].mxu0
        %v946 = vadd.f32 0.0, %v945
        %v947 = vpop.f32.mrb[0].mxu0
        %v948 = vpop.f32.mrb[0].mxu0
        %v949 = vadd.f32 0.0, %v948
        %v950 = vpop.f32.mrb[0].mxu0
        %951 = vdwg.mxu0
        %v952 = vpack.c.bf16 %v603, %v600
        %v953 = vpack.c.bf16 %v764, %v761
        %v954 = vpack.c.bf16 %v925, %v922
        %vm955 = vcmask 64512
        %v957 = vsel %vm955, %v952, 0
        %v960 = vsel %vm955, %v953, 0
        %962 = vmatprep.subr.bf16.mxu0 0
        %963 = vmatpush1.bf16.xpose.msra.mxu0 %v960
        %964 = vmatprep.subr.bf16.mxu0 0
        %965 = vmatpush1.bf16.xpose.msra.mxu0 0
        %966 = vmatprep.subr.bf16.mxu0 0
        %967 = vmatpush1.bf16.xpose.msra.mxu0 0
        %968 = vmatprep.subr.bf16.mxu0 0
        %969 = vmatpush1.bf16.xpose.msra.mxu0 0
        %970 = vmatprep.subr.bf16.mxu0 0
        %971 = vmatpush1.bf16.xpose.msra.mxu0 0
        %972 = vmatprep.subr.bf16.mxu0 0
        %973 = vmatpush1.bf16.xpose.msra.mxu0 0
        %974 = vmatprep.subr.bf16.mxu0 0
        %975 = vmatpush1.bf16.xpose.msra.mxu0 0
        %976 = vmatprep.subr.bf16.mxu0 0
        %977 = vmatpush1.bf16.xpose.msra.mxu0 0
        %978 = vmatprep.subr.bf16.mxu0 0
        %979 = vmatpush1.bf16.xpose.msra.mxu0 0
        %980 = vmatprep.subr.bf16.mxu0 0
        %981 = vmatpush1.bf16.xpose.msra.mxu0 0
        %982 = vmatprep.subr.bf16.mxu0 0
        %983 = vmatpush1.bf16.xpose.msra.mxu0 0
        %984 = vmatprep.subr.bf16.mxu0 0
        %985 = vmatpush1.bf16.xpose.msra.mxu0 0
        %986 = vmatprep.subr.bf16.mxu0 0
        %987 = vmatpush1.bf16.xpose.msra.mxu0 0
        %988 = vmatprep.subr.bf16.mxu0 0
        %989 = vmatpush1.bf16.xpose.msra.mxu0 0
        %990 = vmatprep.subr.bf16.mxu0 0
        %991 = vmatpush1.bf16.xpose.msra.mxu0 0
        %992 = vmatprep.subr.bf16.mxu0 0
        %993 = vmatpush1.bf16.xpose.msra.mxu0 0
        %994 = vmatprep.mubr.bf16.mxu0 0
        %995 = vmatmul.mubr.bf16.gmra.mrb[0].mxu0 %v957
        %v996 = vpop.f32.mrb[0].mxu0
        %v997 = vadd.f32 0.0, %v996
        %v998 = vpop.f32.mrb[0].mxu0
        %v999 = vpop.f32.mrb[0].mxu0
        %v1000 = vadd.f32 0.0, %v999
        %v1001 = vpop.f32.mrb[0].mxu0
        %1002 = vdwg.mxu0
        %vm1003 = vcmask 130048
        %v1004 = vsel %vm1003, %v997, -inf
        %1005 = vmax.xlane.f32.xlu0 %v1004
        %v1006 = vpop.xlane.xlu0 %1005
        %v1007 = vsel %vm1003, %v1000, -inf
        %1008 = vmax.xlane.f32.xlu0 %v1007
        %v1009 = vpop.xlane.xlu0 %1008
        %v1010 = vsub.f32 %v997, %v1006
        %v1011 = vsub.f32 %v1000, %v1009
        %v1012 = vmul.f32 %v1010, 1.442695
        %v1013 = vpow.pop %v1012
        %v1014 = vmul.f32 %v1011, 1.442695
        %v1015 = vpow.pop %v1014
        %v1016 = vsel %vm1003, %v1013, 0.0
        %1017 = vadd.xlane.f32.xlu0 %v1016
        %v1018 = vpop.xlane.xlu0 %1017
        %v1019 = vsel %vm1003, %v1015, 0.0
        %1020 = vadd.xlane.f32.xlu0 %v1019
        %v1021 = vpop.xlane.xlu0 %1020
        %v1022 = vrcp.pop %v1018
        %v1023 = vrcp.pop %v1021
        %v1024 = vmul.f32 %v1013, %v1022
        %v1025 = vmul.f32 %v1015, %v1023
        %v1026 = vadd.f32 %v1024, 0.0
        %v1027 = vadd.f32 %v1025, 0.0
        %v1028 = vpack.c.bf16 %v1025, %v1024
        %v1030 = vsel %vm1003, %v1028, 0
        %1032 = vmatprep.subr.bf16.mxu0 0
        %1033 = vmatpush1.bf16.msra.mxu0 %v954
        %1034 = vmatprep.subr.bf16.mxu0 0
        %1035 = vmatpush1.bf16.msra.mxu0 0
        %1036 = vmatprep.subr.bf16.mxu0 0
        %1037 = vmatpush1.bf16.msra.mxu0 0
        %1038 = vmatprep.subr.bf16.mxu0 0
        %1039 = vmatpush1.bf16.msra.mxu0 0
        %1040 = vmatprep.subr.bf16.mxu0 0
        %1041 = vmatpush1.bf16.msra.mxu0 0
        %1042 = vmatprep.subr.bf16.mxu0 0
        %1043 = vmatpush1.bf16.msra.mxu0 0
        %1044 = vmatprep.subr.bf16.mxu0 0
        %1045 = vmatpush1.bf16.msra.mxu0 0
        %1046 = vmatprep.subr.bf16.mxu0 0
        %1047 = vmatpush1.bf16.msra.mxu0 0
        %1048 = vmatprep.subr.bf16.mxu0 0
        %1049 = vmatpush1.bf16.msra.mxu0 0
        %1050 = vmatprep.subr.bf16.mxu0 0
        %1051 = vmatpush1.bf16.msra.mxu0 0
        %1052 = vmatprep.subr.bf16.mxu0 0
        %1053 = vmatpush1.bf16.msra.mxu0 0
        %1054 = vmatprep.subr.bf16.mxu0 0
        %1055 = vmatpush1.bf16.msra.mxu0 0
        %1056 = vmatprep.subr.bf16.mxu0 0
        %1057 = vmatpush1.bf16.msra.mxu0 0
        %1058 = vmatprep.subr.bf16.mxu0 0
        %1059 = vmatpush1.bf16.msra.mxu0 0
        %1060 = vmatprep.subr.bf16.mxu0 0
        %1061 = vmatpush1.bf16.msra.mxu0 0
        %1062 = vmatprep.subr.bf16.mxu0 0
        %1063 = vmatpush1.bf16.msra.mxu0 0
        %1064 = vmatprep.mubr.bf16.mxu0 0
        %1065 = vmatmul.mubr.bf16.gmra.mrb[0].mxu0 %v1030
        %v1066 = vpop.f32.mrb[0].mxu0
        %v1067 = vadd.f32 0.0, %v1066
        %v1068 = vpop.f32.mrb[0].mxu0
        %v1069 = vpop.f32.mrb[0].mxu0
        %v1070 = vadd.f32 0.0, %v1069
        %v1071 = vpop.f32.mrb[0].mxu0
        %1072 = vdwg.mxu0
        %v1073 = vpack.c.bf16 %v611, %v608
        %v1074 = vpack.c.bf16 %v772, %v769
        %v1075 = vpack.c.bf16 %v933, %v930
        %v1077 = vsel %vm955, %v1073, 0
        %v1080 = vsel %vm955, %v1074, 0
        %1082 = vmatprep.subr.bf16.mxu0 0
        %1083 = vmatpush1.bf16.xpose.msra.mxu0 %v1080
        %1084 = vmatprep.subr.bf16.mxu0 0
        %1085 = vmatpush1.bf16.xpose.msra.mxu0 0
        %1086 = vmatprep.subr.bf16.mxu0 0
        %1087 = vmatpush1.bf16.xpose.msra.mxu0 0
        %1088 = vmatprep.subr.bf16.mxu0 0
        %1089 = vmatpush1.bf16.xpose.msra.mxu0 0
        %1090 = vmatprep.subr.bf16.mxu0 0
        %1091 = vmatpush1.bf16.xpose.msra.mxu0 0
        %1092 = vmatprep.subr.bf16.mxu0 0
        %1093 = vmatpush1.bf16.xpose.msra.mxu0 0
        %1094 = vmatprep.subr.bf16.mxu0 0
        %1095 = vmatpush1.bf16.xpose.msra.mxu0 0
        %1096 = vmatprep.subr.bf16.mxu0 0
        %1097 = vmatpush1.bf16.xpose.msra.mxu0 0
        %1098 = vmatprep.subr.bf16.mxu0 0
        %1099 = vmatpush1.bf16.xpose.msra.mxu0 0
        %1100 = vmatprep.subr.bf16.mxu0 0
        %1101 = vmatpush1.bf16.xpose.msra.mxu0 0
        %1102 = vmatprep.subr.bf16.mxu0 0
        %1103 = vmatpush1.bf16.xpose.msra.mxu0 0
        %1104 = vmatprep.subr.bf16.mxu0 0
        %1105 = vmatpush1.bf16.xpose.msra.mxu0 0
        %1106 = vmatprep.subr.bf16.mxu0 0
        %1107 = vmatpush1.bf16.xpose.msra.mxu0 0
        %1108 = vmatprep.subr.bf16.mxu0 0
        %1109 = vmatpush1.bf16.xpose.msra.mxu0 0
        %1110 = vmatprep.subr.bf16.mxu0 0
        %1111 = vmatpush1.bf16.xpose.msra.mxu0 0
        %1112 = vmatprep.subr.bf16.mxu0 0
        %1113 = vmatpush1.bf16.xpose.msra.mxu0 0
        %1114 = vmatprep.mubr.bf16.mxu0 0
        %1115 = vmatmul.mubr.bf16.gmra.mrb[0].mxu0 %v1077
        %v1116 = vpop.f32.mrb[0].mxu0
        %v1117 = vadd.f32 0.0, %v1116
        %v1118 = vpop.f32.mrb[0].mxu0
        %v1119 = vpop.f32.mrb[0].mxu0
        %v1120 = vadd.f32 0.0, %v1119
        %v1121 = vpop.f32.mrb[0].mxu0
        %1122 = vdwg.mxu0
        %v1123 = vsel %vm1003, %v1117, -inf
        %1124 = vmax.xlane.f32.xlu0 %v1123
        %v1125 = vpop.xlane.xlu0 %1124
        %v1126 = vsel %vm1003, %v1120, -inf
        %1127 = vmax.xlane.f32.xlu0 %v1126
        %v1128 = vpop.xlane.xlu0 %1127
        %v1129 = vsub.f32 %v1117, %v1125
        %v1130 = vsub.f32 %v1120, %v1128
        %v1131 = vmul.f32 %v1129, 1.442695
        %v1132 = vpow.pop %v1131
        %v1133 = vmul.f32 %v1130, 1.442695
        %v1134 = vpow.pop %v1133
        %v1135 = vsel %vm1003, %v1132, 0.0
        %1136 = vadd.xlane.f32.xlu0 %v1135
        %v1137 = vpop.xlane.xlu0 %1136
        %v1138 = vsel %vm1003, %v1134, 0.0
        %1139 = vadd.xlane.f32.xlu0 %v1138
        %v1140 = vpop.xlane.xlu0 %1139
        %v1141 = vrcp.pop %v1137
        %v1142 = vrcp.pop %v1140
        %v1143 = vmul.f32 %v1132, %v1141
        %v1144 = vmul.f32 %v1134, %v1142
        %v1145 = vadd.f32 %v1026, %v1143
        %v1146 = vadd.f32 %v1027, %v1144
        %v1147 = vpack.c.bf16 %v1144, %v1143
        %v1149 = vsel %vm1003, %v1147, 0
        %1151 = vmatprep.subr.bf16.mxu0 0
        %1152 = vmatpush1.bf16.msra.mxu0 %v1075
        %1153 = vmatprep.subr.bf16.mxu0 0
        %1154 = vmatpush1.bf16.msra.mxu0 0
        %1155 = vmatprep.subr.bf16.mxu0 0
        %1156 = vmatpush1.bf16.msra.mxu0 0
        %1157 = vmatprep.subr.bf16.mxu0 0
        %1158 = vmatpush1.bf16.msra.mxu0 0
        %1159 = vmatprep.subr.bf16.mxu0 0
        %1160 = vmatpush1.bf16.msra.mxu0 0
        %1161 = vmatprep.subr.bf16.mxu0 0
        %1162 = vmatpush1.bf16.msra.mxu0 0
        %1163 = vmatprep.subr.bf16.mxu0 0
        %1164 = vmatpush1.bf16.msra.mxu0 0
        %1165 = vmatprep.subr.bf16.mxu0 0
        %1166 = vmatpush1.bf16.msra.mxu0 0
        %1167 = vmatprep.subr.bf16.mxu0 0
        %1168 = vmatpush1.bf16.msra.mxu0 0
        %1169 = vmatprep.subr.bf16.mxu0 0
        %1170 = vmatpush1.bf16.msra.mxu0 0
        %1171 = vmatprep.subr.bf16.mxu0 0
        %1172 = vmatpush1.bf16.msra.mxu0 0
        %1173 = vmatprep.subr.bf16.mxu0 0
        %1174 = vmatpush1.bf16.msra.mxu0 0
        %1175 = vmatprep.subr.bf16.mxu0 0
        %1176 = vmatpush1.bf16.msra.mxu0 0
        %1177 = vmatprep.subr.bf16.mxu0 0
        %1178 = vmatpush1.bf16.msra.mxu0 0
        %1179 = vmatprep.subr.bf16.mxu0 0
        %1180 = vmatpush1.bf16.msra.mxu0 0
        %1181 = vmatprep.subr.bf16.mxu0 0
        %1182 = vmatpush1.bf16.msra.mxu0 0
        %1183 = vmatprep.mubr.bf16.mxu0 0
        %1184 = vmatmul.mubr.bf16.gmra.mrb[0].mxu0 %v1149
        %v1185 = vpop.f32.mrb[0].mxu0
        %v1186 = vadd.f32 0.0, %v1185
        %v1187 = vpop.f32.mrb[0].mxu0
        %v1188 = vpop.f32.mrb[0].mxu0
        %v1189 = vadd.f32 0.0, %v1188
        %v1190 = vpop.f32.mrb[0].mxu0
        %1191 = vdwg.mxu0
        %v1192 = vpack.c.bf16 %v619, %v616
        %v1193 = vpack.c.bf16 %v780, %v777
        %v1194 = vpack.c.bf16 %v941, %v938
        %v1196 = vsel %vm955, %v1192, 0
        %v1199 = vsel %vm955, %v1193, 0
        %1201 = vmatprep.subr.bf16.mxu0 0
        %1202 = vmatpush1.bf16.xpose.msra.mxu0 %v1199
        %1203 = vmatprep.subr.bf16.mxu0 0
        %1204 = vmatpush1.bf16.xpose.msra.mxu0 0
        %1205 = vmatprep.subr.bf16.mxu0 0
        %1206 = vmatpush1.bf16.xpose.msra.mxu0 0
        %1207 = vmatprep.subr.bf16.mxu0 0
        %1208 = vmatpush1.bf16.xpose.msra.mxu0 0
        %1209 = vmatprep.subr.bf16.mxu0 0
        %1210 = vmatpush1.bf16.xpose.msra.mxu0 0
        %1211 = vmatprep.subr.bf16.mxu0 0
        %1212 = vmatpush1.bf16.xpose.msra.mxu0 0
        %1213 = vmatprep.subr.bf16.mxu0 0
        %1214 = vmatpush1.bf16.xpose.msra.mxu0 0
        %1215 = vmatprep.subr.bf16.mxu0 0
        %1216 = vmatpush1.bf16.xpose.msra.mxu0 0
        %1217 = vmatprep.subr.bf16.mxu0 0
        %1218 = vmatpush1.bf16.xpose.msra.mxu0 0
        %1219 = vmatprep.subr.bf16.mxu0 0
        %1220 = vmatpush1.bf16.xpose.msra.mxu0 0
        %1221 = vmatprep.subr.bf16.mxu0 0
        %1222 = vmatpush1.bf16.xpose.msra.mxu0 0
        %1223 = vmatprep.subr.bf16.mxu0 0
        %1224 = vmatpush1.bf16.xpose.msra.mxu0 0
        %1225 = vmatprep.subr.bf16.mxu0 0
        %1226 = vmatpush1.bf16.xpose.msra.mxu0 0
        %1227 = vmatprep.subr.bf16.mxu0 0
        %1228 = vmatpush1.bf16.xpose.msra.mxu0 0
        %1229 = vmatprep.subr.bf16.mxu0 0
        %1230 = vmatpush1.bf16.xpose.msra.mxu0 0
        %1231 = vmatprep.subr.bf16.mxu0 0
        %1232 = vmatpush1.bf16.xpose.msra.mxu0 0
        %1233 = vmatprep.mubr.bf16.mxu0 0
        %1234 = vmatmul.mubr.bf16.gmra.mrb[0].mxu0 %v1196
        %v1235 = vpop.f32.mrb[0].mxu0
        %v1236 = vadd.f32 0.0, %v1235
        %v1237 = vpop.f32.mrb[0].mxu0
        %v1238 = vpop.f32.mrb[0].mxu0
        %v1239 = vadd.f32 0.0, %v1238
        %v1240 = vpop.f32.mrb[0].mxu0
        %1241 = vdwg.mxu0
        %v1242 = vsel %vm1003, %v1236, -inf
        %1243 = vmax.xlane.f32.xlu0 %v1242
        %v1244 = vpop.xlane.xlu0 %1243
        %v1245 = vsel %vm1003, %v1239, -inf
        %1246 = vmax.xlane.f32.xlu0 %v1245
        %v1247 = vpop.xlane.xlu0 %1246
        %v1248 = vsub.f32 %v1236, %v1244
        %v1249 = vsub.f32 %v1239, %v1247
        %v1250 = vmul.f32 %v1248, 1.442695
        %v1251 = vpow.pop %v1250
        %v1252 = vmul.f32 %v1249, 1.442695
        %v1253 = vpow.pop %v1252
        %v1254 = vsel %vm1003, %v1251, 0.0
        %1255 = vadd.xlane.f32.xlu0 %v1254
        %v1256 = vpop.xlane.xlu0 %1255
        %v1257 = vsel %vm1003, %v1253, 0.0
        %1258 = vadd.xlane.f32.xlu0 %v1257
        %v1259 = vpop.xlane.xlu0 %1258
        %v1260 = vrcp.pop %v1256
        %v1261 = vrcp.pop %v1259
        %v1262 = vmul.f32 %v1251, %v1260
        %v1263 = vmul.f32 %v1253, %v1261
        %v1264 = vadd.f32 %v1145, %v1262
        %v1265 = vadd.f32 %v1146, %v1263
        %v1266 = vpack.c.bf16 %v1263, %v1262
        %v1268 = vsel %vm1003, %v1266, 0
        %1270 = vmatprep.subr.bf16.mxu0 0
        %1271 = vmatpush1.bf16.msra.mxu0 %v1194
        %1272 = vmatprep.subr.bf16.mxu0 0
        %1273 = vmatpush1.bf16.msra.mxu0 0
        %1274 = vmatprep.subr.bf16.mxu0 0
        %1275 = vmatpush1.bf16.msra.mxu0 0
        %1276 = vmatprep.subr.bf16.mxu0 0
        %1277 = vmatpush1.bf16.msra.mxu0 0
        %1278 = vmatprep.subr.bf16.mxu0 0
        %1279 = vmatpush1.bf16.msra.mxu0 0
        %1280 = vmatprep.subr.bf16.mxu0 0
        %1281 = vmatpush1.bf16.msra.mxu0 0
        %1282 = vmatprep.subr.bf16.mxu0 0
        %1283 = vmatpush1.bf16.msra.mxu0 0
        %1284 = vmatprep.subr.bf16.mxu0 0
        %1285 = vmatpush1.bf16.msra.mxu0 0
        %1286 = vmatprep.subr.bf16.mxu0 0
        %1287 = vmatpush1.bf16.msra.mxu0 0
        %1288 = vmatprep.subr.bf16.mxu0 0
        %1289 = vmatpush1.bf16.msra.mxu0 0
        %1290 = vmatprep.subr.bf16.mxu0 0
        %1291 = vmatpush1.bf16.msra.mxu0 0
        %1292 = vmatprep.subr.bf16.mxu0 0
        %1293 = vmatpush1.bf16.msra.mxu0 0
        %1294 = vmatprep.subr.bf16.mxu0 0
        %1295 = vmatpush1.bf16.msra.mxu0 0
        %1296 = vmatprep.subr.bf16.mxu0 0
        %1297 = vmatpush1.bf16.msra.mxu0 0
        %1298 = vmatprep.subr.bf16.mxu0 0
        %1299 = vmatpush1.bf16.msra.mxu0 0
        %1300 = vmatprep.subr.bf16.mxu0 0
        %1301 = vmatpush1.bf16.msra.mxu0 0
        %1302 = vmatprep.mubr.bf16.mxu0 0
        %1303 = vmatmul.mubr.bf16.gmra.mrb[0].mxu0 %v1268
        %v1304 = vpop.f32.mrb[0].mxu0
        %v1305 = vadd.f32 0.0, %v1304
        %v1306 = vpop.f32.mrb[0].mxu0
        %v1307 = vpop.f32.mrb[0].mxu0
        %v1308 = vadd.f32 0.0, %v1307
        %v1309 = vpop.f32.mrb[0].mxu0
        %1310 = vdwg.mxu0
        %v1311 = vpack.c.bf16 %v627, %v624
        %v1312 = vpack.c.bf16 %v788, %v785
        %v1313 = vpack.c.bf16 %v949, %v946
        %v1315 = vsel %vm955, %v1311, 0
        %v1318 = vsel %vm955, %v1312, 0
        %1320 = vmatprep.subr.bf16.mxu0 0
        %1321 = vmatpush1.bf16.xpose.msra.mxu0 %v1318
        %1322 = vmatprep.subr.bf16.mxu0 0
        %1323 = vmatpush1.bf16.xpose.msra.mxu0 0
        %1324 = vmatprep.subr.bf16.mxu0 0
        %1325 = vmatpush1.bf16.xpose.msra.mxu0 0
        %1326 = vmatprep.subr.bf16.mxu0 0
        %1327 = vmatpush1.bf16.xpose.msra.mxu0 0
        %1328 = vmatprep.subr.bf16.mxu0 0
        %1329 = vmatpush1.bf16.xpose.msra.mxu0 0
        %1330 = vmatprep.subr.bf16.mxu0 0
        %1331 = vmatpush1.bf16.xpose.msra.mxu0 0
        %1332 = vmatprep.subr.bf16.mxu0 0
        %1333 = vmatpush1.bf16.xpose.msra.mxu0 0
        %1334 = vmatprep.subr.bf16.mxu0 0
        %1335 = vmatpush1.bf16.xpose.msra.mxu0 0
        %1336 = vmatprep.subr.bf16.mxu0 0
        %1337 = vmatpush1.bf16.xpose.msra.mxu0 0
        %1338 = vmatprep.subr.bf16.mxu0 0
        %1339 = vmatpush1.bf16.xpose.msra.mxu0 0
        %1340 = vmatprep.subr.bf16.mxu0 0
        %1341 = vmatpush1.bf16.xpose.msra.mxu0 0
        %1342 = vmatprep.subr.bf16.mxu0 0
        %1343 = vmatpush1.bf16.xpose.msra.mxu0 0
        %1344 = vmatprep.subr.bf16.mxu0 0
        %1345 = vmatpush1.bf16.xpose.msra.mxu0 0
        %1346 = vmatprep.subr.bf16.mxu0 0
        %1347 = vmatpush1.bf16.xpose.msra.mxu0 0
        %1348 = vmatprep.subr.bf16.mxu0 0
        %1349 = vmatpush1.bf16.xpose.msra.mxu0 0
        %1350 = vmatprep.subr.bf16.mxu0 0
        %1351 = vmatpush1.bf16.xpose.msra.mxu0 0
        %1352 = vmatprep.mubr.bf16.mxu0 0
        %1353 = vmatmul.mubr.bf16.gmra.mrb[0].mxu0 %v1315
        %v1354 = vpop.f32.mrb[0].mxu0
        %v1355 = vadd.f32 0.0, %v1354
        %v1356 = vpop.f32.mrb[0].mxu0
        %v1357 = vpop.f32.mrb[0].mxu0
        %v1358 = vadd.f32 0.0, %v1357
        %v1359 = vpop.f32.mrb[0].mxu0
        %1360 = vdwg.mxu0
        %v1361 = vsel %vm1003, %v1355, -inf
        %1362 = vmax.xlane.f32.xlu0 %v1361
        %v1363 = vpop.xlane.xlu0 %1362
        %v1364 = vsel %vm1003, %v1358, -inf
        %1365 = vmax.xlane.f32.xlu0 %v1364
        %v1366 = vpop.xlane.xlu0 %1365
        %v1367 = vsub.f32 %v1355, %v1363
        %v1368 = vsub.f32 %v1358, %v1366
        %v1369 = vmul.f32 %v1367, 1.442695
        %v1370 = vpow.pop %v1369
        %v1371 = vmul.f32 %v1368, 1.442695
        %v1372 = vpow.pop %v1371
        %v1373 = vsel %vm1003, %v1370, 0.0
        %1374 = vadd.xlane.f32.xlu0 %v1373
        %v1375 = vpop.xlane.xlu0 %1374
        %v1376 = vsel %vm1003, %v1372, 0.0
        %1377 = vadd.xlane.f32.xlu0 %v1376
        %v1378 = vpop.xlane.xlu0 %1377
        %v1379 = vrcp.pop %v1375
        %v1380 = vrcp.pop %v1378
        %v1381 = vmul.f32 %v1370, %v1379
        %v1382 = vmul.f32 %v1372, %v1380
        %v1383 = vadd.f32 %v1264, %v1381
        %v1384 = vadd.f32 %v1265, %v1382
        %v1385 = vpack.c.bf16 %v1382, %v1381
        %v1387 = vsel %vm1003, %v1385, 0
        %1389 = vmatprep.subr.bf16.mxu0 0
        %1390 = vmatpush1.bf16.msra.mxu0 %v1313
        %1391 = vmatprep.subr.bf16.mxu0 0
        %1392 = vmatpush1.bf16.msra.mxu0 0
        %1393 = vmatprep.subr.bf16.mxu0 0
        %1394 = vmatpush1.bf16.msra.mxu0 0
        %1395 = vmatprep.subr.bf16.mxu0 0
        %1396 = vmatpush1.bf16.msra.mxu0 0
        %1397 = vmatprep.subr.bf16.mxu0 0
        %1398 = vmatpush1.bf16.msra.mxu0 0
        %1399 = vmatprep.subr.bf16.mxu0 0
        %1400 = vmatpush1.bf16.msra.mxu0 0
        %1401 = vmatprep.subr.bf16.mxu0 0
        %1402 = vmatpush1.bf16.msra.mxu0 0
        %1403 = vmatprep.subr.bf16.mxu0 0
        %1404 = vmatpush1.bf16.msra.mxu0 0
        %1405 = vmatprep.subr.bf16.mxu0 0
        %1406 = vmatpush1.bf16.msra.mxu0 0
        %1407 = vmatprep.subr.bf16.mxu0 0
        %1408 = vmatpush1.bf16.msra.mxu0 0
        %1409 = vmatprep.subr.bf16.mxu0 0
        %1410 = vmatpush1.bf16.msra.mxu0 0
        %1411 = vmatprep.subr.bf16.mxu0 0
        %1412 = vmatpush1.bf16.msra.mxu0 0
        %1413 = vmatprep.subr.bf16.mxu0 0
        %1414 = vmatpush1.bf16.msra.mxu0 0
        %1415 = vmatprep.subr.bf16.mxu0 0
        %1416 = vmatpush1.bf16.msra.mxu0 0
        %1417 = vmatprep.subr.bf16.mxu0 0
        %1418 = vmatpush1.bf16.msra.mxu0 0
        %1419 = vmatprep.subr.bf16.mxu0 0
        %1420 = vmatpush1.bf16.msra.mxu0 0
        %1421 = vmatprep.mubr.bf16.mxu0 0
        %1422 = vmatmul.mubr.bf16.gmra.mrb[0].mxu0 %v1387
        %v1423 = vpop.f32.mrb[0].mxu0
        %v1424 = vadd.f32 0.0, %v1423
        %v1425 = vpop.f32.mrb[0].mxu0
        %v1426 = vpop.f32.mrb[0].mxu0
        %v1427 = vadd.f32 0.0, %v1426
        %v1428 = vpop.f32.mrb[0].mxu0
        %1429 = vdwg.mxu0
        %1432 = vrot.lane.b32.xlu0 %v1186, 8
        %v1433 = vpop.permute.xlu0 %1432
        %1434 = vrot.lane.b32.xlu0 %v1189, 8
        %v1435 = vpop.permute.xlu0 %1434
        %1440 = vrot.lane.b32.xlu0 %v1305, 16
        %v1441 = vpop.permute.xlu0 %1440
        %1442 = vrot.lane.b32.xlu0 %v1308, 16
        %v1443 = vpop.permute.xlu0 %1442
        %1448 = vrot.lane.b32.xlu0 %v1424, 24
        %v1449 = vpop.permute.xlu0 %1448
        %1450 = vrot.lane.b32.xlu0 %v1427, 24
        %v1451 = vpop.permute.xlu0 %1450
        %v1454 = vsel %vm955, %v1067, %v1433
        %v1455 = vsel %vm955, %v1070, %v1435
        %v1456 = vsel %vm1003, %v1454, %v1441
        %v1457 = vsel %vm1003, %v1455, %v1443
        %vm1458 = vcmask 195584
        %v1459 = vsel %vm1458, %v1456, %v1449
        %v1460 = vsel %vm1458, %v1457, %v1451
        %v1461 = vpack.c.bf16 %v1460, %v1459
        %v1462 = vld [vmem:[%s7] sm:$0xf]
        %v1463 = vld [vmem:[%s7 + $0x4] sm:$0xf]
        %v1464 = vld [vmem:[%s7 + $0x8] sm:$0xf]
        %v1465 = vld [vmem:[%s7 + $0xc] sm:$0xf]
        %v1466 = vld [vmem:[%s459] sm:$0xff]
        %v1467 = vld [vmem:[%s459 + $0x8] sm:$0xff]
        %v1472 = vunpack.c.l.b16 %v1462
        %v1473 = vunpack.c.l.b16 %v1463
        %v1474 = vunpack.c.l.b16 %v1464
        %v1475 = vunpack.c.l.b16 %v1465
        %v1476 = vpack.c.b16 %v1473, %v1472
        %v1477 = vpack.c.b16 %v1475, %v1474
        %vm1480 = vcmask 261120
        %v1482 = vsel %vm1480, %v1461, 0
        %1484 = vmatprep.subr.bf16.mxu0 0
        %1485 = vmatpush1.bf16.msra.mxu0 %v1476
        %1486 = vmatprep.subr.bf16.mxu0 0
        %1487 = vmatpush1.bf16.msra.mxu0 %v1477
        %1488 = vmatprep.subr.bf16.mxu0 0
        %1489 = vmatpush1.bf16.msra.mxu0 0
        %1490 = vmatprep.subr.bf16.mxu0 0
        %1491 = vmatpush1.bf16.msra.mxu0 0
        %1492 = vmatprep.subr.bf16.mxu0 0
        %1493 = vmatpush1.bf16.msra.mxu0 0
        %1494 = vmatprep.subr.bf16.mxu0 0
        %1495 = vmatpush1.bf16.msra.mxu0 0
        %1496 = vmatprep.subr.bf16.mxu0 0
        %1497 = vmatpush1.bf16.msra.mxu0 0
        %1498 = vmatprep.subr.bf16.mxu0 0
        %1499 = vmatpush1.bf16.msra.mxu0 0
        %1500 = vmatprep.subr.bf16.mxu0 0
        %1501 = vmatpush1.bf16.msra.mxu0 0
        %1502 = vmatprep.subr.bf16.mxu0 0
        %1503 = vmatpush1.bf16.msra.mxu0 0
        %1504 = vmatprep.subr.bf16.mxu0 0
        %1505 = vmatpush1.bf16.msra.mxu0 0
        %1506 = vmatprep.subr.bf16.mxu0 0
        %1507 = vmatpush1.bf16.msra.mxu0 0
        %1508 = vmatprep.subr.bf16.mxu0 0
        %1509 = vmatpush1.bf16.msra.mxu0 0
        %1510 = vmatprep.subr.bf16.mxu0 0
        %1511 = vmatpush1.bf16.msra.mxu0 0
        %1512 = vmatprep.subr.bf16.mxu0 0
        %1513 = vmatpush1.bf16.msra.mxu0 0
        %1514 = vmatprep.subr.bf16.mxu0 0
        %1515 = vmatpush1.bf16.msra.mxu0 0
        %1516 = vmatprep.mubr.bf16.mxu0 0
        %1517 = vmatmul.mubr.bf16.gmra.mrb[0].mxu0 %v1482
        %v1518 = vpop.f32.mrb[0].mxu0
        %v1519 = vadd.f32 %v1466, %v1518
        %v1520 = vpop.f32.mrb[0].mxu0
        %v1521 = vpop.f32.mrb[0].mxu0
        %v1522 = vadd.f32 %v1467, %v1521
        %v1523 = vpop.f32.mrb[0].mxu0
        %1524 = vdwg.mxu0
        %v1525 = vsel %vm1480, %v1519, 0.0
        %1526 = vadd.xlane.f32.xlu0 %v1525
        %v1527 = vpop.xlane.xlu0 %1526
        %v1528 = vsel %vm1480, %v1522, 0.0
        %1529 = vadd.xlane.f32.xlu0 %v1528
        %v1530 = vpop.xlane.xlu0 %1529
        %v1531 = vrcp.pop 32.0
        %v1532 = vmul.f32 %v1527, %v1531
        %v1533 = vmul.f32 %v1530, %v1531
        %v1534 = vsub.f32 %v1519, %v1532
        %v1535 = vsub.f32 %v1522, %v1533
        %v1536 = vmul.f32 %v1534, %v1534
        %v1537 = vmul.f32 %v1535, %v1535
        %v1538 = vsel %vm1480, %v1536, 0.0
        %1539 = vadd.xlane.f32.xlu0 %v1538
        %v1540 = vpop.xlane.xlu0 %1539
        %v1541 = vsel %vm1480, %v1537, 0.0
        %1542 = vadd.xlane.f32.xlu0 %v1541
        %v1543 = vpop.xlane.xlu0 %1542
        %v1544 = vmul.f32 %v1540, %v1531
        %v1545 = vmul.f32 %v1543, %v1531
        %v1546 = vadd.f32 %v1544, 1e-05
        %v1547 = vadd.f32 %v1545, 1e-05
        %v1548 = vrsqrt.pop %v1546
        %v1549 = vrsqrt.pop %v1547
        %v1550 = vmul.f32 %v1534, %v1548
        %v1551 = vmul.f32 %v1535, %v1549
        %v1552 = vld [vmem:[%s8] sm:$0x1]
        %v1554 = vlaneseq
        %v1555 = vshrl.u32 %v1554, 7
        %v1556 = vsub.s32 0, %v1555
        %v1557 = vrot.slane %v1552, %v1556
        %v1559 = vmul.f32 %v1550, %v1557
        %v1560 = vmul.f32 %v1551, %v1557
        %v1561 = vld [vmem:[%s9] sm:$0x1]
        %v1563 = vlaneseq
        %v1564 = vshrl.u32 %v1563, 7
        %v1565 = vsub.s32 0, %v1564
        %v1566 = vrot.slane %v1561, %v1565
        %v1568 = vadd.f32 %v1559, %v1566
        %v1569 = vadd.f32 %v1560, %v1566
        %1570 = vst.msk [vmem:[%s429] sm:$0xff] %vm1480, %v1568
        %1571 = vst.msk [vmem:[%s429 + $0x8] sm:$0xff] %vm1480, %v1569
        %v1572 = vmul.f32 %v1383, 0.25
        %v1573 = vmul.f32 %v1384, 0.25
        %1574 = vst.msk [vmem:[%s466] sm:$0xff] %vm1003, %v1572
        %1575 = vst.msk [vmem:[%s466 + $0x8] sm:$0xff] %vm1003, %v1573
        %s1576 = sand.u32 %s264, 1
        %s1577 = scalar_lea.sflag [#allocation3], %s1576
        %s1578 = sand.u32 %s264, 1
        %s1579 = smul.addr %s1578, 16
        %s1580 = scalar_lea.vmem [#allocation2], %s1579
        %s1581 = smul.u32 2, %s26
        %p1582 = scmp.lt.s32.totalorder %s1581, 3
        %s1583 = scalar_select %p1582, %s1581, 3
        %s1584 = smul.addr %s1583, 8
        %s1585 = scalar_lea.vmem %s11, %s1584
        // Predicated region
        $region61: #{attention_forward.1} parent=59 // pred_check
          %p1586 = pneg %p274
        $region62: #{attention_forward.1} parent=59 // pred_check_branch
          %1588 = sbr.rel (%p1586) target = $region64
        $region63: #{attention_forward.1} parent=59 // pred_region
          %s1589 = smul.u32 2, %s26
          %s1591 = ssub.s32 256, 256
          %1592 = vsyncadd %s1577, %s1591
          %s1593 = smul.addr %s1589, 128
          %s1594 = scalar_lea.hbm %s10, %s1593
          %s1595 = sshll.u32 %s1580, 4
          %s1596 = int_to_ptr.vmem [resolvable:$true] %s1595
          %1601 = dma.vmem_to_hbm [thread:$0]  %s1596, 256, %s1594, %s1577, 128, 128, 8
        $region64: #{attention_forward.1} parent=59 // pred_fallthru
          _
        // Predicated region
        $region65: #{attention_forward.1} parent=59 // pred_check
          %p1602 = pneg %p300
        $region66: #{attention_forward.1} parent=59 // pred_check_branch
          %1604 = sbr.rel (%p1602) target = $region68
        $region67: #{attention_forward.1} parent=59 // pred_region
          %s1605 = smul.u32 2, %s26
        $region68: #{attention_forward.1} parent=59 // pred_fallthru
          _
      $region60: #{attention_forward.1} parent=5 // pred_fallthru
        _
      %p1606 = scmp.le.s32.totalorder 2, %s21
      // Predicated region
      $region69: #{attention_forward.1} parent=5 // pred_check
        %p1607 = pneg %p1606
      $region70: #{attention_forward.1} parent=5 // pred_check_branch
        %1609 = sbr.rel (%p1607) target = $region72
      $region71: #{attention_forward.1} parent=5 // pred_region
        %s1610 = ssub.s32 %s21, 2
        // Predicated region
        $region73: #{attention_forward.1} parent=71 // pred_check
          %p1611 = pneg %p280
        $region74: #{attention_forward.1} parent=71 // pred_check_branch
          %1613 = sbr.rel (%p1611) target = $region76
        $region75: #{attention_forward.1} parent=71 // pred_region
          %s1614 = sand.u32 %s265, 1
          %s1615 = scalar_lea.sflag [#allocation3], %s1614
          %s1616 = sand.u32 %s265, 1
          %s1617 = smul.addr %s1616, 16
          %s1618 = scalar_lea.vmem [#allocation2], %s1617
          %1619 = dma.done %s1615, 256
        $region76: #{attention_forward.1} parent=71 // pred_fallthru
          _
        // Predicated region
        $region77: #{attention_forward.1} parent=71 // pred_check
          %p1620 = pneg %p306
        $region78: #{attention_forward.1} parent=71 // pred_check_branch
          %1622 = sbr.rel (%p1620) target = $region80
        $region79: #{attention_forward.1} parent=71 // pred_region
          %s1623 = smul.u32 2, %s27
          %p1624 = scmp.lt.s32.totalorder %s1623, 3
          %s1625 = scalar_select %p1624, %s1623, 3
          %s1626 = smul.addr %s1625, 8
          %s1627 = scalar_lea.vmem %s11, %s1626
        $region80: #{attention_forward.1} parent=71 // pred_fallthru
          _
      $region72: #{attention_forward.1} parent=5 // pred_fallthru
        _
    $region6: #{attention_forward.1} parent=1 // loop_footer
      %s25 = sadd.s32 1, %s21
    $region7: #{attention_forward.1} parent=1 // loop_footer_branch
      %20 = sbr.rel target = $region3
    $region8: #{attention_forward.1} parent=1 // loop_exit
      _
    %1628 = vsyncpa [#allocation3], 1
    %s1629 = scalar_lea.sflag [#allocation3], 1
    %1630 = vsyncpa %s1629, 1

</llo_original>
